<compile_context>
chip_gen: v6e
topology: v6e:2x2x1
jax: 0.10.0
libtpu: 0.0.40
codegen_flags: <defaults>
</compile_context>

<pallas_src>
import functools

import jax
import jax.numpy as jnp
from jax.experimental import pallas as pl
from jax.experimental.pallas import tpu as pltpu

CIN = 3            # input channels
CSTEM = 32         # real conv output channels
CPAD = 128         # lane-padded conv output channels
NUM_CLASSES = 29   # real classifier classes
NPAD = 128         # lane-padded classes


# ----------------------------------------------------------------------------
# Fused kernel: conv3x3 + bias + ReLU + global-average-pool + linear head.
# One (image, row-tile) per grid step; per-image accumulator in VMEM scratch.
# ----------------------------------------------------------------------------
def _make_fused_kernel(tile_h, width, hw_total):
    p_rows = tile_h * width  # output pixels per row-tile

    def kernel(x_ref, cw_ref, cb_ref, hw_ref, hb_ref, o_ref, acc_ref):
        r = pl.program_id(1)

        @pl.when(r == 0)
        def _init():
            acc_ref[...] = jnp.zeros_like(acc_ref)

        # Halo row-tile of the zero-padded image: (tile_h+2, W+2, Cin).
        # Stored bf16 in HBM; all in-kernel math in f32.
        xt = x_ref[...][0].astype(jnp.float32)
        cw = cw_ref[...].astype(jnp.float32)                    # (9, Cin, CPAD)

        # 3x3 conv as 9 accumulated GEMMs over shifted VMEM views (no im2col).
        conv = jnp.zeros((p_rows, CPAD), jnp.float32)
        for dy in range(3):
            for dx in range(3):
                tap = xt[dy:dy + tile_h, dx:dx + width, :].reshape(p_rows, CIN)
                conv = conv + jnp.dot(tap, cw[3 * dy + dx],
                                      preferred_element_type=jnp.float32)

        act = jnp.maximum(conv + cb_ref[...], 0.0)              # (p_rows, CPAD)
        acc_ref[...] = acc_ref[...] + jnp.sum(act, axis=0, keepdims=True)

        @pl.when(r == pl.num_programs(1) - 1)
        def _finalize():
            pooled = acc_ref[...] * (1.0 / float(hw_total))      # (1, CPAD)
            logits = jnp.dot(pooled, hw_ref[...],
                             preferred_element_type=jnp.float32) + hb_ref[...]
            o_ref[...] = logits.reshape(1, 1, NPAD)

    return kernel


def _pick_tile_h(h, target=8):
    t = min(target, h)
    while h % t:
        t -= 1
    return t


# ----------------------------------------------------------------------------
# Wrapper: layout glue + pallas_call.
# ----------------------------------------------------------------------------
@functools.partial(jax.jit, static_argnames=("tile_h_target",))
def model_forward(x_nchw, params, tile_h_target=8):
    """Forward pass matching Model(x): (N, 3, H, W) -> (N, 29) logits."""
    n, cin, h, w = x_nchw.shape
    assert cin == CIN
    tile_h = _pick_tile_h(h, tile_h_target)
    r_tiles = h // tile_h

    # NCHW -> NHWC, bf16 in HBM (kernel upcasts to f32 for compute).
    x_nhwc = jnp.transpose(x_nchw, (0, 2, 3, 1)).astype(jnp.bfloat16)
    xp = jnp.pad(x_nhwc, ((0, 0), (1, 1), (1, 1), (0, 0)))       # (N, H+2, W+2, Cin)

    # Pre-cut row tiles with a 2-row halo (only 2 rows/tile duplicated).
    tiles = jnp.stack(
        [xp[:, rr * tile_h: rr * tile_h + tile_h + 2] for rr in range(r_tiles)],
        axis=1)                                                  # (N, R, th+2, W+2, Cin)
    tiles = tiles.reshape(n * r_tiles, tile_h + 2, w + 2, CIN)

    kernel = _make_fused_kernel(tile_h, w, h * w)

    out = pl.pallas_call(
        kernel,
        out_shape=jax.ShapeDtypeStruct((n, 1, NPAD), jnp.float32),
        grid_spec=pltpu.PrefetchScalarGridSpec(
            num_scalar_prefetch=0,
            grid=(n, r_tiles),
            in_specs=[
                pl.BlockSpec((1, tile_h + 2, w + 2, CIN),
                             lambda i, r: (i * r_tiles + r, 0, 0, 0)),
                pl.BlockSpec((9, CIN, CPAD), lambda i, r: (0, 0, 0)),
                pl.BlockSpec((1, CPAD), lambda i, r: (0, 0)),
                pl.BlockSpec((CPAD, NPAD), lambda i, r: (0, 0)),
                pl.BlockSpec((1, NPAD), lambda i, r: (0, 0)),
            ],
            out_specs=pl.BlockSpec((1, 1, NPAD), lambda i, r: (i, 0, 0)),
            scratch_shapes=[pltpu.VMEM((1, CPAD), jnp.float32)],
        ),
        compiler_params=pltpu.CompilerParams(
            dimension_semantics=("parallel", "arbitrary"),
            vmem_limit_bytes=32 * 1024 * 1024,
        ),
    )(tiles, params["conv_w"], params["conv_b"],
      params["head_w"], params["head_b"])

    return out[:, 0, :NUM_CLASSES]


# ----------------------------------------------------------------------------
# Parameters (zero-padded to 128 lanes for lane-dense stores).
# ----------------------------------------------------------------------------
def init_params(key):
    k1, k2, k3, k4 = jax.random.split(key, 4)
    conv_w = jax.random.normal(k1, (9, CIN, CSTEM), jnp.float32) * 0.1
    conv_b = jax.random.normal(k2, (CSTEM,), jnp.float32) * 0.01
    head_w = jax.random.normal(k3, (CSTEM, NUM_CLASSES), jnp.float32) * 0.1
    head_b = jax.random.normal(k4, (NUM_CLASSES,), jnp.float32) * 0.01
    # TODO(synk): if real timm weights are ever loaded, the PyTorch conv weight
    # (Cout, Cin, KH, KW) must be permuted to this (KH*KW, Cin, Cout) order.
    conv_w_p = jnp.zeros((9, CIN, CPAD), jnp.float32).at[:, :, :CSTEM].set(conv_w)
    conv_b_p = jnp.zeros((1, CPAD), jnp.float32).at[0, :CSTEM].set(conv_b)
    head_w_p = jnp.zeros((CPAD, NPAD), jnp.float32).at[:CSTEM, :NUM_CLASSES].set(head_w)
    head_b_p = jnp.zeros((1, NPAD), jnp.float32).at[0, :NUM_CLASSES].set(head_b)
    return {"conv_w": conv_w_p.astype(jnp.bfloat16),   # bf16 in HBM
            "conv_b": conv_b_p,
            "head_w": head_w_p,
            "head_b": head_b_p}


# ----------------------------------------------------------------------------
# Pure-JAX reference for a correctness check.
# ----------------------------------------------------------------------------
def reference_forward(x_nchw, params):
    xf = jnp.transpose(x_nchw, (0, 2, 3, 1)).astype(jnp.bfloat16).astype(jnp.float32)
    cw = params["conv_w"].astype(jnp.float32).reshape(3, 3, CIN, CPAD)
    conv = jax.lax.conv_general_dilated(
        xf, cw, window_strides=(1, 1), padding="SAME",
        dimension_numbers=("NHWC", "HWIO", "NHWC"))
    act = jnp.maximum(conv + params["conv_b"].reshape(1, 1, 1, CPAD), 0.0)
    pooled = jnp.mean(act, axis=(1, 2))                         # (N, CPAD)
    logits = pooled @ params["head_w"] + params["head_b"]
    return logits[:, :NUM_CLASSES]


if __name__ == "__main__":
    # TODO(synk): `model_name` is unspecified in the original module; the timm
    # backbone is approximated by a single conv stem + GAP + linear head.
    key = jax.random.PRNGKey(0)
    kx, kp = jax.random.split(key)

    N, H, W = 2, 16, 16
    x = jax.random.normal(kx, (N, CIN, H, W), jnp.float32)      # NCHW like PyTorch
    params = init_params(kp)

    logits = model_forward(x, params)
    jax.block_until_ready(logits)
    assert logits.shape == (N, NUM_CLASSES) and logits.dtype == jnp.float32

    ref = reference_forward(x, params)
    assert jnp.allclose(logits, ref, atol=2e-3, rtol=2e-3), (
        "max abs diff = %f" % float(jnp.max(jnp.abs(logits - ref))))

    print("KERNEL_OK")
</pallas_src>

<mosaic_0001>
module attributes {stable_mosaic.version = 11 : i64} {
  func.func @kernel(%arg0: i32, %arg1: i32, %arg2: memref<1x10x18x3xbf16, #tpu.memory_space<vmem>>, %arg3: memref<9x3x128xbf16, #tpu.memory_space<vmem>>, %arg4: memref<1x128xf32, #tpu.memory_space<vmem>>, %arg5: memref<128x128xf32, #tpu.memory_space<vmem>>, %arg6: memref<1x128xf32, #tpu.memory_space<vmem>>, %arg7: memref<1x1x128xf32, #tpu.memory_space<vmem>>, %arg8: memref<1x128xf32, #tpu.memory_space<vmem>>) attributes {dimension_semantics = [#tpu.dimension_semantics<parallel>, #tpu.dimension_semantics<arbitrary>], iteration_bounds = array<i64: 2, 2>, scalar_prefetch = 0 : i64, scratch_operands = 1 : i64, tpu.core_type = #tpu.core_type<tc>, window_params = [{transform_indices = @transform_0, window_bounds = array<i64: 1, 10, 18, 3>}, {pipeline_mode = #tpu.pipeline_mode<synchronous>, transform_indices = @transform_1, window_bounds = array<i64: 9, 3, 128>}, {pipeline_mode = #tpu.pipeline_mode<synchronous>, transform_indices = @transform_2, window_bounds = array<i64: 1, 128>}, {pipeline_mode = #tpu.pipeline_mode<synchronous>, transform_indices = @transform_3, window_bounds = array<i64: 128, 128>}, {pipeline_mode = #tpu.pipeline_mode<synchronous>, transform_indices = @transform_4, window_bounds = array<i64: 1, 128>}, {transform_indices = @transform_5, window_bounds = array<i64: 1, 1, 128>}]} {
    %c0_i32 = arith.constant 0 : i32
    %0 = arith.cmpi eq, %arg1, %c0_i32 : i32
    %1 = arith.extui %0 : i1 to i32
    %c0_i32_0 = arith.constant 0 : i32
    %2 = arith.cmpi ne, %1, %c0_i32_0 : i32
    scf.if %2 {
      %cst_25 = arith.constant 0.000000e+00 : f32
      %76 = vector.broadcast %cst_25 : f32 to vector<1x128xf32>
      %c0_26 = arith.constant 0 : index
      %c0_27 = arith.constant 0 : index
      %77 = vector.load %arg8[%c0_26, %c0_27] : memref<1x128xf32, #tpu.memory_space<vmem>>, vector<1x128xf32>
      tpu.vector_store %arg8[%c0_26, %c0_27], %76 {strides = array<i32>} : memref<1x128xf32, #tpu.memory_space<vmem>>, vector<1x128xf32>,
    } else {
    }
    %c0 = arith.constant 0 : index
    %c0_1 = arith.constant 0 : index
    %c0_2 = arith.constant 0 : index
    %c0_3 = arith.constant 0 : index
    %3 = vector.load %arg2[%c0, %c0_1, %c0_2, %c0_3] : memref<1x10x18x3xbf16, #tpu.memory_space<vmem>>, vector<1x10x18x3xbf16>
    %4 = vector.shape_cast %3 : vector<1x10x18x3xbf16> to vector<10x18x3xbf16>
    %5 = arith.extf %4 : vector<10x18x3xbf16> to vector<10x18x3xf32>
    %c0_4 = arith.constant 0 : index
    %c0_5 = arith.constant 0 : index
    %c0_6 = arith.constant 0 : index
    %6 = vector.load %arg3[%c0_4, %c0_5, %c0_6] : memref<9x3x128xbf16, #tpu.memory_space<vmem>>, vector<9x3x128xbf16>
    %7 = arith.extf %6 : vector<9x3x128xbf16> to vector<9x3x128xf32>
    %cst = arith.constant 0.000000e+00 : f32
    %8 = vector.broadcast %cst : f32 to vector<128x128xf32>
    %9 = vector.extract_strided_slice %5 {offsets = [0, 0, 0], sizes = [8, 16, 3], strides = [1, 1, 1]} : vector<10x18x3xf32> to vector<8x16x3xf32>
    %10 = vector.shape_cast %9 : vector<8x16x3xf32> to vector<128x3xf32>
    %11 = vector.extract_strided_slice %7 {offsets = [0, 0, 0], sizes = [1, 3, 128], strides = [1, 1, 1]} : vector<9x3x128xf32> to vector<1x3x128xf32>
    %12 = vector.shape_cast %11 : vector<1x3x128xf32> to vector<3x128xf32>
    %cst_7 = arith.constant dense<0.000000e+00> : vector<128x128xf32>
    %13 = tpu.matmul %10, %12, %cst_7 {dimension_numbers = #tpu.dot_dimension_numbers<[1], [0], [0], [1], [0, 0, 1, 1], [], []>} : vector<128x3xf32>, vector<3x128xf32>, vector<128x128xf32> -> vector<128x128xf32>
    %14 = arith.addf %8, %13 : vector<128x128xf32>
    %15 = vector.extract_strided_slice %5 {offsets = [0, 1, 0], sizes = [8, 16, 3], strides = [1, 1, 1]} : vector<10x18x3xf32> to vector<8x16x3xf32>
    %16 = vector.shape_cast %15 : vector<8x16x3xf32> to vector<128x3xf32>
    %17 = vector.extract_strided_slice %7 {offsets = [1, 0, 0], sizes = [1, 3, 128], strides = [1, 1, 1]} : vector<9x3x128xf32> to vector<1x3x128xf32>
    %18 = vector.shape_cast %17 : vector<1x3x128xf32> to vector<3x128xf32>
    %cst_8 = arith.constant dense<0.000000e+00> : vector<128x128xf32>
    %19 = tpu.matmul %16, %18, %cst_8 {dimension_numbers = #tpu.dot_dimension_numbers<[1], [0], [0], [1], [0, 0, 1, 1], [], []>} : vector<128x3xf32>, vector<3x128xf32>, vector<128x128xf32> -> vector<128x128xf32>
    %20 = arith.addf %14, %19 : vector<128x128xf32>
    %21 = vector.extract_strided_slice %5 {offsets = [0, 2, 0], sizes = [8, 16, 3], strides = [1, 1, 1]} : vector<10x18x3xf32> to vector<8x16x3xf32>
    %22 = vector.shape_cast %21 : vector<8x16x3xf32> to vector<128x3xf32>
    %23 = vector.extract_strided_slice %7 {offsets = [2, 0, 0], sizes = [1, 3, 128], strides = [1, 1, 1]} : vector<9x3x128xf32> to vector<1x3x128xf32>
    %24 = vector.shape_cast %23 : vector<1x3x128xf32> to vector<3x128xf32>
    %cst_9 = arith.constant dense<0.000000e+00> : vector<128x128xf32>
    %25 = tpu.matmul %22, %24, %cst_9 {dimension_numbers = #tpu.dot_dimension_numbers<[1], [0], [0], [1], [0, 0, 1, 1], [], []>} : vector<128x3xf32>, vector<3x128xf32>, vector<128x128xf32> -> vector<128x128xf32>
    %26 = arith.addf %20, %25 : vector<128x128xf32>
    %27 = vector.extract_strided_slice %5 {offsets = [1, 0, 0], sizes = [8, 16, 3], strides = [1, 1, 1]} : vector<10x18x3xf32> to vector<8x16x3xf32>
    %28 = vector.shape_cast %27 : vector<8x16x3xf32> to vector<128x3xf32>
    %29 = vector.extract_strided_slice %7 {offsets = [3, 0, 0], sizes = [1, 3, 128], strides = [1, 1, 1]} : vector<9x3x128xf32> to vector<1x3x128xf32>
    %30 = vector.shape_cast %29 : vector<1x3x128xf32> to vector<3x128xf32>
    %cst_10 = arith.constant dense<0.000000e+00> : vector<128x128xf32>
    %31 = tpu.matmul %28, %30, %cst_10 {dimension_numbers = #tpu.dot_dimension_numbers<[1], [0], [0], [1], [0, 0, 1, 1], [], []>} : vector<128x3xf32>, vector<3x128xf32>, vector<128x128xf32> -> vector<128x128xf32>
    %32 = arith.addf %26, %31 : vector<128x128xf32>
    %33 = vector.extract_strided_slice %5 {offsets = [1, 1, 0], sizes = [8, 16, 3], strides = [1, 1, 1]} : vector<10x18x3xf32> to vector<8x16x3xf32>
    %34 = vector.shape_cast %33 : vector<8x16x3xf32> to vector<128x3xf32>
    %35 = vector.extract_strided_slice %7 {offsets = [4, 0, 0], sizes = [1, 3, 128], strides = [1, 1, 1]} : vector<9x3x128xf32> to vector<1x3x128xf32>
    %36 = vector.shape_cast %35 : vector<1x3x128xf32> to vector<3x128xf32>
    %cst_11 = arith.constant dense<0.000000e+00> : vector<128x128xf32>
    %37 = tpu.matmul %34, %36, %cst_11 {dimension_numbers = #tpu.dot_dimension_numbers<[1], [0], [0], [1], [0, 0, 1, 1], [], []>} : vector<128x3xf32>, vector<3x128xf32>, vector<128x128xf32> -> vector<128x128xf32>
    %38 = arith.addf %32, %37 : vector<128x128xf32>
    %39 = vector.extract_strided_slice %5 {offsets = [1, 2, 0], sizes = [8, 16, 3], strides = [1, 1, 1]} : vector<10x18x3xf32> to vector<8x16x3xf32>
    %40 = vector.shape_cast %39 : vector<8x16x3xf32> to vector<128x3xf32>
    %41 = vector.extract_strided_slice %7 {offsets = [5, 0, 0], sizes = [1, 3, 128], strides = [1, 1, 1]} : vector<9x3x128xf32> to vector<1x3x128xf32>
    %42 = vector.shape_cast %41 : vector<1x3x128xf32> to vector<3x128xf32>
    %cst_12 = arith.constant dense<0.000000e+00> : vector<128x128xf32>
    %43 = tpu.matmul %40, %42, %cst_12 {dimension_numbers = #tpu.dot_dimension_numbers<[1], [0], [0], [1], [0, 0, 1, 1], [], []>} : vector<128x3xf32>, vector<3x128xf32>, vector<128x128xf32> -> vector<128x128xf32>
    %44 = arith.addf %38, %43 : vector<128x128xf32>
    %45 = vector.extract_strided_slice %5 {offsets = [2, 0, 0], sizes = [8, 16, 3], strides = [1, 1, 1]} : vector<10x18x3xf32> to vector<8x16x3xf32>
    %46 = vector.shape_cast %45 : vector<8x16x3xf32> to vector<128x3xf32>
    %47 = vector.extract_strided_slice %7 {offsets = [6, 0, 0], sizes = [1, 3, 128], strides = [1, 1, 1]} : vector<9x3x128xf32> to vector<1x3x128xf32>
    %48 = vector.shape_cast %47 : vector<1x3x128xf32> to vector<3x128xf32>
    %cst_13 = arith.constant dense<0.000000e+00> : vector<128x128xf32>
    %49 = tpu.matmul %46, %48, %cst_13 {dimension_numbers = #tpu.dot_dimension_numbers<[1], [0], [0], [1], [0, 0, 1, 1], [], []>} : vector<128x3xf32>, vector<3x128xf32>, vector<128x128xf32> -> vector<128x128xf32>
    %50 = arith.addf %44, %49 : vector<128x128xf32>
    %51 = vector.extract_strided_slice %5 {offsets = [2, 1, 0], sizes = [8, 16, 3], strides = [1, 1, 1]} : vector<10x18x3xf32> to vector<8x16x3xf32>
    %52 = vector.shape_cast %51 : vector<8x16x3xf32> to vector<128x3xf32>
    %53 = vector.extract_strided_slice %7 {offsets = [7, 0, 0], sizes = [1, 3, 128], strides = [1, 1, 1]} : vector<9x3x128xf32> to vector<1x3x128xf32>
    %54 = vector.shape_cast %53 : vector<1x3x128xf32> to vector<3x128xf32>
    %cst_14 = arith.constant dense<0.000000e+00> : vector<128x128xf32>
    %55 = tpu.matmul %52, %54, %cst_14 {dimension_numbers = #tpu.dot_dimension_numbers<[1], [0], [0], [1], [0, 0, 1, 1], [], []>} : vector<128x3xf32>, vector<3x128xf32>, vector<128x128xf32> -> vector<128x128xf32>
    %56 = arith.addf %50, %55 : vector<128x128xf32>
    %57 = vector.extract_strided_slice %5 {offsets = [2, 2, 0], sizes = [8, 16, 3], strides = [1, 1, 1]} : vector<10x18x3xf32> to vector<8x16x3xf32>
    %58 = vector.shape_cast %57 : vector<8x16x3xf32> to vector<128x3xf32>
    %59 = vector.extract_strided_slice %7 {offsets = [8, 0, 0], sizes = [1, 3, 128], strides = [1, 1, 1]} : vector<9x3x128xf32> to vector<1x3x128xf32>
    %60 = vector.shape_cast %59 : vector<1x3x128xf32> to vector<3x128xf32>
    %cst_15 = arith.constant dense<0.000000e+00> : vector<128x128xf32>
    %61 = tpu.matmul %58, %60, %cst_15 {dimension_numbers = #tpu.dot_dimension_numbers<[1], [0], [0], [1], [0, 0, 1, 1], [], []>} : vector<128x3xf32>, vector<3x128xf32>, vector<128x128xf32> -> vector<128x128xf32>
    %62 = arith.addf %56, %61 : vector<128x128xf32>
    %c0_16 = arith.constant 0 : index
    %c0_17 = arith.constant 0 : index
    %63 = vector.load %arg4[%c0_16, %c0_17] : memref<1x128xf32, #tpu.memory_space<vmem>>, vector<1x128xf32>
    %64 = vector.broadcast %63 : vector<1x128xf32> to vector<128x128xf32>
    %65 = arith.addf %62, %64 : vector<128x128xf32>
    %cst_18 = arith.constant 0.000000e+00 : f32
    %66 = vector.broadcast %cst_18 : f32 to vector<128x128xf32>
    %67 = arith.maximumf %65, %66 : vector<128x128xf32>
    %c0_19 = arith.constant 0 : index
    %c0_20 = arith.constant 0 : index
    %68 = vector.load %arg8[%c0_19, %c0_20] : memref<1x128xf32, #tpu.memory_space<vmem>>, vector<1x128xf32>
    %cst_21 = arith.constant dense<0.000000e+00> : vector<128xf32>
    %69 = vector.multi_reduction <add>, %67, %cst_21 [0] : vector<128x128xf32> to vector<128xf32>
    %70 = vector.shape_cast %69 : vector<128xf32> to vector<1x128xf32>
    %71 = arith.addf %68, %70 : vector<1x128xf32>
    %c0_22 = arith.constant 0 : index
    %c0_23 = arith.constant 0 : index
    %72 = vector.load %arg8[%c0_22, %c0_23] : memref<1x128xf32, #tpu.memory_space<vmem>>, vector<1x128xf32>
    tpu.vector_store %arg8[%c0_22, %c0_23], %71 {strides = array<i32>} : memref<1x128xf32, #tpu.memory_space<vmem>>, vector<1x128xf32>,
    %c1_i32 = arith.constant 1 : i32
    %73 = arith.cmpi eq, %arg1, %c1_i32 : i32
    %74 = arith.extui %73 : i1 to i32
    %c0_i32_24 = arith.constant 0 : i32
    %75 = arith.cmpi ne, %74, %c0_i32_24 : i32
    scf.if %75 {
      %c0_25 = arith.constant 0 : index
      %c0_26 = arith.constant 0 : index
      %76 = vector.load %arg8[%c0_25, %c0_26] : memref<1x128xf32, #tpu.memory_space<vmem>>, vector<1x128xf32>
      %cst_27 = arith.constant 3.906250e-03 : f32
      %77 = vector.broadcast %cst_27 : f32 to vector<1x128xf32>
      %78 = arith.mulf %76, %77 : vector<1x128xf32>
      %c0_28 = arith.constant 0 : index
      %c0_29 = arith.constant 0 : index
      %79 = vector.load %arg5[%c0_28, %c0_29] : memref<128x128xf32, #tpu.memory_space<vmem>>, vector<128x128xf32>
      %cst_30 = arith.constant dense<0.000000e+00> : vector<1x128xf32>
      %80 = tpu.matmul %78, %79, %cst_30 {dimension_numbers = #tpu.dot_dimension_numbers<[1], [0], [0], [1], [0, 0, 1, 1], [], []>} : vector<1x128xf32>, vector<128x128xf32>, vector<1x128xf32> -> vector<1x128xf32>
      %c0_31 = arith.constant 0 : index
      %c0_32 = arith.constant 0 : index
      %81 = vector.load %arg6[%c0_31, %c0_32] : memref<1x128xf32, #tpu.memory_space<vmem>>, vector<1x128xf32>
      %82 = arith.addf %80, %81 : vector<1x128xf32>
      %83 = vector.shape_cast %82 : vector<1x128xf32> to vector<1x1x128xf32>
      %c0_33 = arith.constant 0 : index
      %c0_34 = arith.constant 0 : index
      %c0_35 = arith.constant 0 : index
      %84 = vector.load %arg7[%c0_33, %c0_34, %c0_35] : memref<1x1x128xf32, #tpu.memory_space<vmem>>, vector<1x1x128xf32>
      tpu.vector_store %arg7[%c0_33, %c0_34, %c0_35], %83 {strides = array<i32>} : memref<1x1x128xf32, #tpu.memory_space<vmem>>, vector<1x1x128xf32>,
    } else {
    }
    return
  }
  func.func @transform_0(%arg0: i32, %arg1: i32) -> (i32, i32, i32, i32) {
    %c2_i32 = arith.constant 2 : i32
    %0 = arith.muli %arg0, %c2_i32 : i32
    %1 = arith.addi %0, %arg1 : i32
    %c0_i32 = arith.constant 0 : i32
    %c0_i32_0 = arith.constant 0 : i32
    %c0_i32_1 = arith.constant 0 : i32
    %c0_i32_2 = arith.constant 0 : i32
    return %1, %c0_i32, %c0_i32_0, %c0_i32_1 : i32, i32, i32, i32
  }
  func.func @transform_1(%arg0: i32, %arg1: i32) -> (i32, i32, i32) {
    %c0_i32 = arith.constant 0 : i32
    %c0_i32_0 = arith.constant 0 : i32
    %c0_i32_1 = arith.constant 0 : i32
    %c0_i32_2 = arith.constant 0 : i32
    return %c0_i32, %c0_i32_0, %c0_i32_1 : i32, i32, i32
  }
  func.func @transform_2(%arg0: i32, %arg1: i32) -> (i32, i32) {
    %c0_i32 = arith.constant 0 : i32
    %c0_i32_0 = arith.constant 0 : i32
    %c0_i32_1 = arith.constant 0 : i32
    return %c0_i32, %c0_i32_0 : i32, i32
  }
  func.func @transform_3(%arg0: i32, %arg1: i32) -> (i32, i32) {
    %c0_i32 = arith.constant 0 : i32
    %c0_i32_0 = arith.constant 0 : i32
    %c0_i32_1 = arith.constant 0 : i32
    return %c0_i32, %c0_i32_0 : i32, i32
  }
  func.func @transform_4(%arg0: i32, %arg1: i32) -> (i32, i32) {
    %c0_i32 = arith.constant 0 : i32
    %c0_i32_0 = arith.constant 0 : i32
    %c0_i32_1 = arith.constant 0 : i32
    return %c0_i32, %c0_i32_0 : i32, i32
  }
  func.func @transform_5(%arg0: i32, %arg1: i32) -> (i32, i32, i32) {
    %c0_i32 = arith.constant 0 : i32
    %c0_i32_0 = arith.constant 0 : i32
    %c0_i32_1 = arith.constant 0 : i32
    return %arg0, %c0_i32, %c0_i32_0 : i32, i32, i32
  }
}

</mosaic_0001>

<llo_original>
// kernel: model_forward.1
$region0: #{model_forward.1}
  #allocation0 [shape = 'u32[]', space=smem, size = 0x4, offset = 0x4, fixed_abs, tag = 'smem constant byte address 0x4 - core index']
  #allocation1 [shape = 'u32[144,128]{1,0:T(1,128)}', space=vmem, size = 0x12000, scoped, tag = 'internal scratch']
  #allocation2 [shape = 'f32[1,128]{1,0:T(1,128)}', space=vmem, size = 0x200, scoped, tag = 'scratch operand']
  %s0 = inlined_call_operand.vmem [shape: bf16[4,10,18,3], index: 0, kind: input, shape index: {}]
  %s1 = inlined_call_operand.vmem [shape: bf16[9,3,128], index: 1, kind: input, shape index: {}]
  %s2 = inlined_call_operand.vmem [shape: f32[1,128], index: 2, kind: input, shape index: {}]
  %s3 = inlined_call_operand.vmem [shape: f32[128,128], index: 3, kind: input, shape index: {}]
  %s4 = inlined_call_operand.vmem [shape: f32[1,128], index: 4, kind: input, shape index: {}]
  %s5 = inlined_call_operand.hbm [shape: f32[2,1,128], index: 5, kind: output, shape index: {}]
  %s6 = sld [smem:[#allocation0]]
  $region61: #{model_forward.1} parent=0
    _
  %s8 = ssub.s32 1, %s6
  %s9 = scalar_select 0, %s8, %s6
  $region1: #{model_forward.1} parent=0
    #allocation3 [shape = 'u8[1024]{0}', space=vmem, size = 0x400, scoped, tag = 'output window, operand 0']
    #allocation4 [shape = 's32[2]{0}', space=sflag, size = 0x8, scoped, tag = 'scoped memory for model_forward.1']
    %10 = vsyncpa [#allocation4], 0
    %s11 = scalar_lea.sflag [#allocation4], 1
    %12 = vsyncpa %s11, 0
    loop: start=0, step=1, limit=6
    $region2: #{model_forward.1} parent=1 // loop_pre_header
      _
    $region3: #{model_forward.1} parent=1 // loop_header
      %s14 = sphi 0, %s18
      %p15 = scmp.ge.s32.totalorder %s14, 6
      %s21 = sphi 0, %s33
      %s22 = sphi 0, %s29
      %s23 = sphi 0, %s21
      %s24 = sphi 0, %s22
      %s25 = sphi 0, %s23
      %s26 = sphi 0, %s24
      %s40 = sphi 0, %s42
      %s43 = sphi 0, %s40
      %s44 = sphi 0, %s43
      %s60 = sphi 0, %s44
      %s64 = sphi 0, %s64
      %s66 = sphi 0, %s64
      %s67 = sphi 0, %s66
      %s81 = sphi 0, %s67
      %s85 = sphi 0, %s85
      %s87 = sphi 0, %s85
      %s88 = sphi 0, %s87
      %s102 = sphi 0, %s88
      %s106 = sphi 0, %s106
      %s108 = sphi 0, %s106
      %s109 = sphi 0, %s108
      %s123 = sphi 0, %s109
      %s127 = sphi 0, %s127
      %s129 = sphi 0, %s127
      %s130 = sphi 0, %s129
      %s144 = sphi 0, %s130
      %s150 = sphi 0, %s152
      %s153 = sphi 0, %s150
      %s154 = sphi 0, %s153
      %s170 = sphi 0, %s154
    $region4: #{model_forward.1} parent=1 // loop_header_branch
      %17 = sbr.rel (%p15) target = $region8
    $region5: #{model_forward.1} parent=1 // loop_body
      %s19 = ssub.s32 %s14, 1
      %s20 = ssub.s32 %s14, 2
      %s27 = sadd.s32 1, %s22
      %p28 = scmp.ge.s32.totalorder %s27, 2
      %s29 = scalar_select %p28, 0, %s27
      %s30 = sadd.s32 1, %s21
      %s31 = scalar_select %p28, %s30, %s21
      %p32 = scmp.ge.s32.totalorder %s31, 2
      %s33 = scalar_select %p32, 0, %s31
      %s34 = smul.u32 %s21, 2
      %s35 = sadd.s32 %s34, %s22
      %s36 = smul.u32 %s33, 2
      %s37 = sadd.s32 %s36, %s29
      %s38 = ssub.s32 %s35, %s37
      %p39 = scmp.eq.s32.totalorder %s38, 0
      %s41 = sadd.s32 %s40, 1
      %s42 = scalar_select %p39, %s40, %s41
      %p45 = pneg %p39
      %p46 = scmp.eq.s32.totalorder %s14, 3
      %p47 = por %p45, %p46
      %p48 = scmp.ne.s32.totalorder %s40, %s43
      %p49 = scmp.eq.s32.totalorder %s14, 0
      %p50 = por %p48, %p49
      %p51 = scmp.ne.s32.totalorder %s40, %s43
      %p52 = scmp.eq.s32.totalorder %s19, 3
      %p53 = por %p51, %p52
      %p54 = scmp.ne.s32.totalorder %s43, %s44
      %p55 = scmp.eq.s32.totalorder %s19, 0
      %p56 = por %p54, %p55
      %p57 = scmp.ne.s32.totalorder %s43, %s44
      %p58 = scmp.eq.s32.totalorder %s20, 3
      %p59 = por %p57, %p58
      %p61 = scmp.ne.s32.totalorder %s44, %s60
      %p62 = scmp.eq.s32.totalorder %s20, 0
      %p63 = por %p61, %p62
      %s65 = sadd.s32 %s64, 1
      %p68 = scmp.eq.s32.totalorder %s14, 3
      %p69 = scmp.ne.s32.totalorder %s64, %s66
      %p70 = scmp.eq.s32.totalorder %s14, 0
      %p71 = por %p69, %p70
      %p72 = scmp.ne.s32.totalorder %s64, %s66
      %p73 = scmp.eq.s32.totalorder %s19, 3
      %p74 = por %p72, %p73
      %p75 = scmp.ne.s32.totalorder %s66, %s67
      %p76 = scmp.eq.s32.totalorder %s19, 0
      %p77 = por %p75, %p76
      %p78 = scmp.ne.s32.totalorder %s66, %s67
      %p79 = scmp.eq.s32.totalorder %s20, 3
      %p80 = por %p78, %p79
      %p82 = scmp.ne.s32.totalorder %s67, %s81
      %p83 = scmp.eq.s32.totalorder %s20, 0
      %p84 = por %p82, %p83
      %s86 = sadd.s32 %s85, 1
      %p89 = scmp.eq.s32.totalorder %s14, 3
      %p90 = scmp.ne.s32.totalorder %s85, %s87
      %p91 = scmp.eq.s32.totalorder %s14, 0
      %p92 = por %p90, %p91
      %p93 = scmp.ne.s32.totalorder %s85, %s87
      %p94 = scmp.eq.s32.totalorder %s19, 3
      %p95 = por %p93, %p94
      %p96 = scmp.ne.s32.totalorder %s87, %s88
      %p97 = scmp.eq.s32.totalorder %s19, 0
      %p98 = por %p96, %p97
      %p99 = scmp.ne.s32.totalorder %s87, %s88
      %p100 = scmp.eq.s32.totalorder %s20, 3
      %p101 = por %p99, %p100
      %p103 = scmp.ne.s32.totalorder %s88, %s102
      %p104 = scmp.eq.s32.totalorder %s20, 0
      %p105 = por %p103, %p104
      %s107 = sadd.s32 %s106, 1
      %p110 = scmp.eq.s32.totalorder %s14, 3
      %p111 = scmp.ne.s32.totalorder %s106, %s108
      %p112 = scmp.eq.s32.totalorder %s14, 0
      %p113 = por %p111, %p112
      %p114 = scmp.ne.s32.totalorder %s106, %s108
      %p115 = scmp.eq.s32.totalorder %s19, 3
      %p116 = por %p114, %p115
      %p117 = scmp.ne.s32.totalorder %s108, %s109
      %p118 = scmp.eq.s32.totalorder %s19, 0
      %p119 = por %p117, %p118
      %p120 = scmp.ne.s32.totalorder %s108, %s109
      %p121 = scmp.eq.s32.totalorder %s20, 3
      %p122 = por %p120, %p121
      %p124 = scmp.ne.s32.totalorder %s109, %s123
      %p125 = scmp.eq.s32.totalorder %s20, 0
      %p126 = por %p124, %p125
      %s128 = sadd.s32 %s127, 1
      %p131 = scmp.eq.s32.totalorder %s14, 3
      %p132 = scmp.ne.s32.totalorder %s127, %s129
      %p133 = scmp.eq.s32.totalorder %s14, 0
      %p134 = por %p132, %p133
      %p135 = scmp.ne.s32.totalorder %s127, %s129
      %p136 = scmp.eq.s32.totalorder %s19, 3
      %p137 = por %p135, %p136
      %p138 = scmp.ne.s32.totalorder %s129, %s130
      %p139 = scmp.eq.s32.totalorder %s19, 0
      %p140 = por %p138, %p139
      %p141 = scmp.ne.s32.totalorder %s129, %s130
      %p142 = scmp.eq.s32.totalorder %s20, 3
      %p143 = por %p141, %p142
      %p145 = scmp.ne.s32.totalorder %s130, %s144
      %p146 = scmp.eq.s32.totalorder %s20, 0
      %p147 = por %p145, %p146
      %s148 = ssub.s32 %s21, %s33
      %p149 = scmp.eq.s32.totalorder %s148, 0
      %s151 = sadd.s32 %s150, 1
      %s152 = scalar_select %p149, %s150, %s151
      %p155 = pneg %p149
      %p156 = scmp.eq.s32.totalorder %s14, 3
      %p157 = por %p155, %p156
      %p158 = scmp.ne.s32.totalorder %s150, %s153
      %p159 = scmp.eq.s32.totalorder %s14, 0
      %p160 = por %p158, %p159
      %p161 = scmp.ne.s32.totalorder %s150, %s153
      %p162 = scmp.eq.s32.totalorder %s19, 3
      %p163 = por %p161, %p162
      %p164 = scmp.ne.s32.totalorder %s153, %s154
      %p165 = scmp.eq.s32.totalorder %s19, 0
      %p166 = por %p164, %p165
      %p167 = scmp.ne.s32.totalorder %s153, %s154
      %p168 = scmp.eq.s32.totalorder %s20, 3
      %p169 = por %p167, %p168
      %p171 = scmp.ne.s32.totalorder %s154, %s170
      %p172 = scmp.eq.s32.totalorder %s20, 0
      %p173 = por %p171, %p172
      %p174 = scmp.le.s32.totalorder 1, %s14
      %p175 = scmp.lt.s32.totalorder %s14, 5
      %p176 = pnand %p174, %p175
      %p177 = pneg %p176
      // Predicated region
      $region9: #{model_forward.1} parent=5 // pred_check
        _
      $region10: #{model_forward.1} parent=5 // pred_check_branch
        %179 = sbr.rel (%p176) target = $region12
      $region11: #{model_forward.1} parent=5 // pred_region
        %s180 = ssub.s32 %s14, 1
        // Predicated region
        $region13: #{model_forward.1} parent=11 // pred_check
          %p181 = pneg %p77
        $region14: #{model_forward.1} parent=11 // pred_check_branch
          %183 = sbr.rel (%p181) target = $region16
        $region15: #{model_forward.1} parent=11 // pred_region
          _
        $region16: #{model_forward.1} parent=11 // pred_fallthru
          _
        // Predicated region
        $region17: #{model_forward.1} parent=11 // pred_check
          %p184 = pneg %p98
        $region18: #{model_forward.1} parent=11 // pred_check_branch
          %186 = sbr.rel (%p184) target = $region20
        $region19: #{model_forward.1} parent=11 // pred_region
          _
        $region20: #{model_forward.1} parent=11 // pred_fallthru
          _
        // Predicated region
        $region21: #{model_forward.1} parent=11 // pred_check
          %p187 = pneg %p119
        $region22: #{model_forward.1} parent=11 // pred_check_branch
          %189 = sbr.rel (%p187) target = $region24
        $region23: #{model_forward.1} parent=11 // pred_region
          _
        $region24: #{model_forward.1} parent=11 // pred_fallthru
          _
        // Predicated region
        $region25: #{model_forward.1} parent=11 // pred_check
          %p190 = pneg %p140
        $region26: #{model_forward.1} parent=11 // pred_check_branch
          %192 = sbr.rel (%p190) target = $region28
        $region27: #{model_forward.1} parent=11 // pred_region
          _
        $region28: #{model_forward.1} parent=11 // pred_fallthru
          _
      $region12: #{model_forward.1} parent=5 // pred_fallthru
        _
      %p193 = scmp.lt.s32.totalorder %s14, 4
      // Predicated region
      $region29: #{model_forward.1} parent=5 // pred_check
        %p194 = pneg %p193
      $region30: #{model_forward.1} parent=5 // pred_check_branch
        %196 = sbr.rel (%p194) target = $region32
      $region31: #{model_forward.1} parent=5 // pred_region
        // Predicated region
        $region33: #{model_forward.1} parent=31 // pred_check
          %p197 = pneg %p50
        $region34: #{model_forward.1} parent=31 // pred_check_branch
          %199 = sbr.rel (%p197) target = $region36
        $region35: #{model_forward.1} parent=31 // pred_region
          %s200 = smul.u32 %s21, 2
          %s201 = sadd.s32 %s200, %s22
          %p202 = scmp.lt.s32.totalorder %s201, 3
          %s203 = scalar_select %p202, %s201, 3
          %s204 = smul.addr %s203, 30
          %s205 = smul.addr %s204, 4
          %s206 = scalar_lea.vmem %s0, %s205
          %s207 = smul.u32 %s21, 2
          %s208 = sadd.s32 %s207, %s22
        $region36: #{model_forward.1} parent=31 // pred_fallthru
          _
      $region32: #{model_forward.1} parent=5 // pred_fallthru
        _
      %p209 = scmp.le.s32.totalorder 1, %s14
      %p210 = scmp.lt.s32.totalorder %s14, 5
      %p211 = pnand %p209, %p210
      %p212 = pneg %p211
      // Predicated region
      $region37: #{model_forward.1} parent=5 // pred_check
        _
      $region38: #{model_forward.1} parent=5 // pred_check_branch
        %214 = sbr.rel (%p211) target = $region40
      $region39: #{model_forward.1} parent=5 // pred_region
        %s215 = ssub.s32 %s14, 1
        %s216 = smul.u32 %s23, 2
        %s217 = sadd.s32 %s216, %s24
        %p218 = scmp.lt.s32.totalorder %s217, 3
        %s219 = scalar_select %p218, %s217, 3
        %s220 = smul.addr %s219, 30
        %s221 = smul.addr %s220, 4
        %s222 = scalar_lea.vmem %s0, %s221
        %p223 = pneg %p56
        %p224 = pneg %p53
        %p225 = pneg %p77
        %p226 = pneg %p74
        %p227 = pneg %p98
        %p228 = pneg %p95
        %p229 = pneg %p119
        %p230 = pneg %p116
        %p231 = pneg %p140
        %p232 = pneg %p137
        %p233 = pneg %p166
        %p234 = pneg %p163
        %s235 = sand.u32 %s153, 1
        %s236 = scalar_lea.sflag [#allocation4], %s235
        %s237 = sand.u32 %s153, 1
        %s238 = scalar_lea.vmem [#allocation3], %s237
        %s239 = smul.u32 %s23, 2
        %s240 = sadd.s32 %s239, %s24
        %p241 = scmp.lt.s32.totalorder %s240, 3
        %s242 = scalar_select %p241, %s240, 3
        %s243 = smul.addr %s242, 30
        %s244 = smul.addr %s243, 4
        %s245 = scalar_lea.vmem %s0, %s244
        %s246 = smul.u32 %s23, 2
        %s247 = sadd.s32 %s246, %s24
        %p248 = scmp.eq.s32.totalorder %s24, 0
        // Predicated region
        $region41: #{model_forward.1} parent=39 // pred_check
          %p249 = pneg %p248
        $region42: #{model_forward.1} parent=39 // pred_check_branch
          %251 = sbr.rel (%p249) target = $region44
        $region43: #{model_forward.1} parent=39 // pred_region
          %252 = vst [vmem:[#allocation2] sm:$0x1] 0.0
        $region44: #{model_forward.1} parent=39 // pred_fallthru
          _
        %v253 = vld [vmem:[%s245] sm:$0xf]
        %v254 = vld [vmem:[%s245 + $0x4] sm:$0xf]
        %v255 = vld [vmem:[%s245 + $0x8] sm:$0x1]
        %v256 = vld [vmem:[%s245 + $0xc] sm:$0xf]
        %v257 = vld [vmem:[%s245 + $0x10] sm:$0xf]
        %v258 = vld [vmem:[%s245 + $0x14] sm:$0x1]
        %v259 = vld [vmem:[%s245 + $0x18] sm:$0xf]
        %v260 = vld [vmem:[%s245 + $0x1c] sm:$0xf]
        %v261 = vld [vmem:[%s245 + $0x20] sm:$0x1]
        %v262 = vld [vmem:[%s245 + $0x24] sm:$0xf]
        %v263 = vld [vmem:[%s245 + $0x28] sm:$0xf]
        %v264 = vld [vmem:[%s245 + $0x2c] sm:$0x1]
        %v265 = vld [vmem:[%s245 + $0x30] sm:$0xf]
        %v266 = vld [vmem:[%s245 + $0x34] sm:$0xf]
        %v267 = vld [vmem:[%s245 + $0x38] sm:$0x1]
        %v268 = vld [vmem:[%s245 + $0x3c] sm:$0xf]
        %v269 = vld [vmem:[%s245 + $0x40] sm:$0xf]
        %v270 = vld [vmem:[%s245 + $0x44] sm:$0x1]
        %v271 = vld [vmem:[%s245 + $0x48] sm:$0xf]
        %v272 = vld [vmem:[%s245 + $0x4c] sm:$0xf]
        %v273 = vld [vmem:[%s245 + $0x50] sm:$0x1]
        %v274 = vld [vmem:[%s245 + $0x54] sm:$0xf]
        %v275 = vld [vmem:[%s245 + $0x58] sm:$0xf]
        %v276 = vld [vmem:[%s245 + $0x5c] sm:$0x1]
        %v277 = vld [vmem:[%s245 + $0x60] sm:$0xf]
        %v278 = vld [vmem:[%s245 + $0x64] sm:$0xf]
        %v279 = vld [vmem:[%s245 + $0x68] sm:$0x1]
        %v280 = vld [vmem:[%s245 + $0x6c] sm:$0xf]
        %v281 = vld [vmem:[%s245 + $0x70] sm:$0xf]
        %v282 = vld [vmem:[%s245 + $0x74] sm:$0x1]
        %v283 = vunpack.c.l.bf16 %v253
        %v284 = vunpack.c.l.bf16 %v254
        %v285 = vunpack.c.l.bf16 %v255
        %v286 = vunpack.c.l.bf16 %v256
        %v287 = vunpack.c.l.bf16 %v257
        %v288 = vunpack.c.l.bf16 %v258
        %v289 = vunpack.c.l.bf16 %v259
        %v290 = vunpack.c.l.bf16 %v260
        %v291 = vunpack.c.l.bf16 %v261
        %v292 = vunpack.c.l.bf16 %v262
        %v293 = vunpack.c.l.bf16 %v263
        %v294 = vunpack.c.l.bf16 %v264
        %v295 = vunpack.c.l.bf16 %v265
        %v296 = vunpack.c.l.bf16 %v266
        %v297 = vunpack.c.l.bf16 %v267
        %v298 = vunpack.c.l.bf16 %v268
        %v299 = vunpack.c.l.bf16 %v269
        %v300 = vunpack.c.l.bf16 %v270
        %v301 = vunpack.c.l.bf16 %v271
        %v302 = vunpack.c.l.bf16 %v272
        %v303 = vunpack.c.l.bf16 %v273
        %v304 = vunpack.c.l.bf16 %v274
        %v305 = vunpack.c.l.bf16 %v275
        %v306 = vunpack.c.l.bf16 %v276
        %v307 = vunpack.c.l.bf16 %v277
        %v308 = vunpack.c.l.bf16 %v278
        %v309 = vunpack.c.l.bf16 %v279
        %v310 = vunpack.c.l.bf16 %v280
        %v311 = vunpack.c.l.bf16 %v281
        %v312 = vunpack.c.l.bf16 %v282
        %v313 = vld [vmem:[%s1] sm:$0x3]
        %v314 = vld [vmem:[%s1 + $0x2] sm:$0x3]
        %v315 = vld [vmem:[%s1 + $0x4] sm:$0x3]
        %v316 = vld [vmem:[%s1 + $0x6] sm:$0x3]
        %v317 = vld [vmem:[%s1 + $0x8] sm:$0x3]
        %v318 = vld [vmem:[%s1 + $0xa] sm:$0x3]
        %v319 = vld [vmem:[%s1 + $0xc] sm:$0x3]
        %v320 = vld [vmem:[%s1 + $0xe] sm:$0x3]
        %v321 = vld [vmem:[%s1 + $0x10] sm:$0x3]
        %v322 = vunpack.c.l.bf16 %v313
        %v323 = vunpack.c.l.bf16 %v314
        %v324 = vunpack.c.l.bf16 %v315
        %v325 = vunpack.c.l.bf16 %v316
        %v326 = vunpack.c.l.bf16 %v317
        %v327 = vunpack.c.l.bf16 %v318
        %v328 = vunpack.c.l.bf16 %v319
        %v329 = vunpack.c.l.bf16 %v320
        %v330 = vunpack.c.l.bf16 %v321
        %vm355 = vcmask 1046528
        %v356 = vrot.slane %v283, 1
        %v357 = vrot.slane %v284, 1
        %v358 = vsel %vm355, %v356, %v357
        %v359 = vrot.slane %v285, 1
        %v360 = vsel %vm355, %v357, %v359
        %v361 = vrot.slane %v286, 1
        %v362 = vrot.slane %v287, 1
        %v363 = vsel %vm355, %v361, %v362
        %v364 = vrot.slane %v288, 1
        %v365 = vsel %vm355, %v362, %v364
        %v366 = vrot.slane %v289, 1
        %v367 = vrot.slane %v290, 1
        %v368 = vsel %vm355, %v366, %v367
        %v369 = vrot.slane %v291, 1
        %v370 = vsel %vm355, %v367, %v369
        %v371 = vrot.slane %v292, 1
        %v372 = vrot.slane %v293, 1
        %v373 = vsel %vm355, %v371, %v372
        %v374 = vrot.slane %v294, 1
        %v375 = vsel %vm355, %v372, %v374
        %v376 = vrot.slane %v295, 1
        %v377 = vrot.slane %v296, 1
        %v378 = vsel %vm355, %v376, %v377
        %v379 = vrot.slane %v297, 1
        %v380 = vsel %vm355, %v377, %v379
        %v381 = vrot.slane %v298, 1
        %v382 = vrot.slane %v299, 1
        %v383 = vsel %vm355, %v381, %v382
        %v384 = vrot.slane %v300, 1
        %v385 = vsel %vm355, %v382, %v384
        %v386 = vrot.slane %v301, 1
        %v387 = vrot.slane %v302, 1
        %v388 = vsel %vm355, %v386, %v387
        %v389 = vrot.slane %v303, 1
        %v390 = vsel %vm355, %v387, %v389
        %v391 = vrot.slane %v304, 1
        %v392 = vrot.slane %v305, 1
        %v393 = vsel %vm355, %v391, %v392
        %v394 = vrot.slane %v306, 1
        %v395 = vsel %vm355, %v392, %v394
        %vm396 = vcmask 23552
        %v397 = vsel %vm396, %v358, 0
        %v399 = vsel %vm396, %v360, 0
        %v401 = vsel %vm396, %v363, 0
        %v403 = vsel %vm396, %v365, 0
        %v405 = vsel %vm396, %v368, 0
        %v407 = vsel %vm396, %v370, 0
        %v409 = vsel %vm396, %v373, 0
        %v411 = vsel %vm396, %v375, 0
        %v413 = vsel %vm396, %v378, 0
        %v415 = vsel %vm396, %v380, 0
        %v417 = vsel %vm396, %v383, 0
        %v419 = vsel %vm396, %v385, 0
        %v421 = vsel %vm396, %v388, 0
        %v423 = vsel %vm396, %v390, 0
        %v425 = vsel %vm396, %v393, 0
        %v427 = vsel %vm396, %v395, 0
        %vm429 = vcmask 1042432
        %v431 = vsel %vm429, %v323, 0
        %433 = vmatprep.subr.mxu0 0.0
        %434 = vmatpush1.msra.mxu0 0.0
        %435 = vmatprep.subr.mxu0 0.0
        %436 = vmatpush1.msra.mxu0 0.0
        %437 = vmatprep.subr.mxu0 0.0
        %438 = vmatpush1.msra.mxu0 0.0
        %439 = vmatprep.subr.mxu0 0.0
        %440 = vmatpush1.msra.mxu0 0.0
        %441 = vmatprep.subr.mxu0 0.0
        %442 = vmatpush1.msra.mxu0 0.0
        %443 = vmatprep.subr.mxu0 0.0
        %444 = vmatpush1.msra.mxu0 0.0
        %445 = vmatprep.subr.mxu0 0.0
        %446 = vmatpush1.msra.mxu0 0.0
        %447 = vmatprep.subr.mxu0 0.0
        %448 = vmatpush1.msra.mxu0 0.0
        %449 = vmatprep.subr.mxu0 0.0
        %450 = vmatpush1.msra.mxu0 0.0
        %451 = vmatprep.subr.mxu0 0.0
        %452 = vmatpush1.msra.mxu0 0.0
        %453 = vmatprep.subr.mxu0 0.0
        %454 = vmatpush1.msra.mxu0 0.0
        %455 = vmatprep.subr.mxu0 0.0
        %456 = vmatpush1.msra.mxu0 0.0
        %457 = vmatprep.subr.mxu0 0.0
        %458 = vmatpush1.msra.mxu0 0.0
        %459 = vmatprep.subr.mxu0 0.0
        %460 = vmatpush1.msra.mxu0 0.0
        %461 = vmatprep.subr.mxu0 0.0
        %462 = vmatpush1.msra.mxu0 0.0
        %463 = vmatprep.subr.mxu0 0.0
        %464 = vmatpush1.msra.mxu0 %v431
        %465 = vmatprep.subr.mxu0 0.0
        %466 = vmatpush2.msra.mxu0 0.0
        %467 = vmatprep.subr.mxu0 0.0
        %468 = vmatpush2.msra.mxu0 0.0
        %469 = vmatprep.subr.mxu0 0.0
        %470 = vmatpush2.msra.mxu0 0.0
        %471 = vmatprep.subr.mxu0 0.0
        %472 = vmatpush2.msra.mxu0 0.0
        %473 = vmatprep.subr.mxu0 0.0
        %474 = vmatpush2.msra.mxu0 0.0
        %475 = vmatprep.subr.mxu0 0.0
        %476 = vmatpush2.msra.mxu0 0.0
        %477 = vmatprep.subr.mxu0 0.0
        %478 = vmatpush2.msra.mxu0 0.0
        %479 = vmatprep.subr.mxu0 0.0
        %480 = vmatpush2.msra.mxu0 0.0
        %481 = vmatprep.subr.mxu0 0.0
        %482 = vmatpush2.msra.mxu0 0.0
        %483 = vmatprep.subr.mxu0 0.0
        %484 = vmatpush2.msra.mxu0 0.0
        %485 = vmatprep.subr.mxu0 0.0
        %486 = vmatpush2.msra.mxu0 0.0
        %487 = vmatprep.subr.mxu0 0.0
        %488 = vmatpush2.msra.mxu0 0.0
        %489 = vmatprep.subr.mxu0 0.0
        %490 = vmatpush2.msra.mxu0 0.0
        %491 = vmatprep.subr.mxu0 0.0
        %492 = vmatpush2.msra.mxu0 0.0
        %493 = vmatprep.subr.mxu0 0.0
        %494 = vmatpush2.msra.mxu0 0.0
        %495 = vmatprep.subr.mxu0 0.0
        %496 = vmatpush2.msra.mxu0 0.0
        %497 = vmatprep.mubr.f32.mxu0 0.0
        %498 = vmatmul.mubr.f32.gmra.mxu0 %v397
        %v499 = vpop.f32.mrf.mxu0
        %v500 = vadd.f32 0.0, %v499
        %v501 = vpop.f32.mrf.mxu0
        %502 = vmatprep.mubr.f32.mxu0 0.0
        %503 = vmatmul.mubr.f32.gmra.mxu0 %v399
        %v504 = vpop.f32.mrf.mxu0
        %v505 = vadd.f32 0.0, %v504
        %v506 = vpop.f32.mrf.mxu0
        %507 = vmatprep.mubr.f32.mxu0 0.0
        %508 = vmatmul.mubr.f32.gmra.mxu0 %v401
        %v509 = vpop.f32.mrf.mxu0
        %v510 = vadd.f32 0.0, %v509
        %v511 = vpop.f32.mrf.mxu0
        %512 = vmatprep.mubr.f32.mxu0 0.0
        %513 = vmatmul.mubr.f32.gmra.mxu0 %v403
        %v514 = vpop.f32.mrf.mxu0
        %v515 = vadd.f32 0.0, %v514
        %v516 = vpop.f32.mrf.mxu0
        %517 = vmatprep.mubr.f32.mxu0 0.0
        %518 = vmatmul.mubr.f32.gmra.mxu0 %v405
        %v519 = vpop.f32.mrf.mxu0
        %v520 = vadd.f32 0.0, %v519
        %v521 = vpop.f32.mrf.mxu0
        %522 = vmatprep.mubr.f32.mxu0 0.0
        %523 = vmatmul.mubr.f32.gmra.mxu0 %v407
        %v524 = vpop.f32.mrf.mxu0
        %v525 = vadd.f32 0.0, %v524
        %v526 = vpop.f32.mrf.mxu0
        %527 = vmatprep.mubr.f32.mxu0 0.0
        %528 = vmatmul.mubr.f32.gmra.mxu0 %v409
        %v529 = vpop.f32.mrf.mxu0
        %v530 = vadd.f32 0.0, %v529
        %v531 = vpop.f32.mrf.mxu0
        %532 = vmatprep.mubr.f32.mxu0 0.0
        %533 = vmatmul.mubr.f32.gmra.mxu0 %v411
        %v534 = vpop.f32.mrf.mxu0
        %v535 = vadd.f32 0.0, %v534
        %v536 = vpop.f32.mrf.mxu0
        %537 = vmatprep.mubr.f32.mxu0 0.0
        %538 = vmatmul.mubr.f32.gmra.mxu0 %v413
        %v539 = vpop.f32.mrf.mxu0
        %v540 = vadd.f32 0.0, %v539
        %v541 = vpop.f32.mrf.mxu0
        %542 = vmatprep.mubr.f32.mxu0 0.0
        %543 = vmatmul.mubr.f32.gmra.mxu0 %v415
        %v544 = vpop.f32.mrf.mxu0
        %v545 = vadd.f32 0.0, %v544
        %v546 = vpop.f32.mrf.mxu0
        %547 = vmatprep.mubr.f32.mxu0 0.0
        %548 = vmatmul.mubr.f32.gmra.mxu0 %v417
        %v549 = vpop.f32.mrf.mxu0
        %v550 = vadd.f32 0.0, %v549
        %v551 = vpop.f32.mrf.mxu0
        %552 = vmatprep.mubr.f32.mxu0 0.0
        %553 = vmatmul.mubr.f32.gmra.mxu0 %v419
        %v554 = vpop.f32.mrf.mxu0
        %v555 = vadd.f32 0.0, %v554
        %v556 = vpop.f32.mrf.mxu0
        %557 = vmatprep.mubr.f32.mxu0 0.0
        %558 = vmatmul.mubr.f32.gmra.mxu0 %v421
        %v559 = vpop.f32.mrf.mxu0
        %v560 = vadd.f32 0.0, %v559
        %v561 = vpop.f32.mrf.mxu0
        %562 = vmatprep.mubr.f32.mxu0 0.0
        %563 = vmatmul.mubr.f32.gmra.mxu0 %v423
        %v564 = vpop.f32.mrf.mxu0
        %v565 = vadd.f32 0.0, %v564
        %v566 = vpop.f32.mrf.mxu0
        %567 = vmatprep.mubr.f32.mxu0 0.0
        %568 = vmatmul.mubr.f32.gmra.mxu0 %v425
        %v569 = vpop.f32.mrf.mxu0
        %v570 = vadd.f32 0.0, %v569
        %v571 = vpop.f32.mrf.mxu0
        %572 = vmatprep.mubr.f32.mxu0 0.0
        %573 = vmatmul.mubr.f32.gmra.mxu0 %v427
        %v574 = vpop.f32.mrf.mxu0
        %v575 = vadd.f32 0.0, %v574
        %v576 = vpop.f32.mrf.mxu0
        %577 = vdwg.mxu0
        %v578 = vsel %vm396, %v283, 0
        %v580 = vsel %vm396, %v284, 0
        %v582 = vsel %vm396, %v286, 0
        %v584 = vsel %vm396, %v287, 0
        %v586 = vsel %vm396, %v289, 0
        %v588 = vsel %vm396, %v290, 0
        %v590 = vsel %vm396, %v292, 0
        %v592 = vsel %vm396, %v293, 0
        %v594 = vsel %vm396, %v295, 0
        %v596 = vsel %vm396, %v296, 0
        %v598 = vsel %vm396, %v298, 0
        %v600 = vsel %vm396, %v299, 0
        %v602 = vsel %vm396, %v301, 0
        %v604 = vsel %vm396, %v302, 0
        %v606 = vsel %vm396, %v304, 0
        %v608 = vsel %vm396, %v305, 0
        %v611 = vsel %vm429, %v322, 0
        %613 = vmatprep.subr.mxu0 0.0
        %614 = vmatpush1.msra.mxu0 0.0
        %615 = vmatprep.subr.mxu0 0.0
        %616 = vmatpush1.msra.mxu0 0.0
        %617 = vmatprep.subr.mxu0 0.0
        %618 = vmatpush1.msra.mxu0 0.0
        %619 = vmatprep.subr.mxu0 0.0
        %620 = vmatpush1.msra.mxu0 0.0
        %621 = vmatprep.subr.mxu0 0.0
        %622 = vmatpush1.msra.mxu0 0.0
        %623 = vmatprep.subr.mxu0 0.0
        %624 = vmatpush1.msra.mxu0 0.0
        %625 = vmatprep.subr.mxu0 0.0
        %626 = vmatpush1.msra.mxu0 0.0
        %627 = vmatprep.subr.mxu0 0.0
        %628 = vmatpush1.msra.mxu0 0.0
        %629 = vmatprep.subr.mxu0 0.0
        %630 = vmatpush1.msra.mxu0 0.0
        %631 = vmatprep.subr.mxu0 0.0
        %632 = vmatpush1.msra.mxu0 0.0
        %633 = vmatprep.subr.mxu0 0.0
        %634 = vmatpush1.msra.mxu0 0.0
        %635 = vmatprep.subr.mxu0 0.0
        %636 = vmatpush1.msra.mxu0 0.0
        %637 = vmatprep.subr.mxu0 0.0
        %638 = vmatpush1.msra.mxu0 0.0
        %639 = vmatprep.subr.mxu0 0.0
        %640 = vmatpush1.msra.mxu0 0.0
        %641 = vmatprep.subr.mxu0 0.0
        %642 = vmatpush1.msra.mxu0 0.0
        %643 = vmatprep.subr.mxu0 0.0
        %644 = vmatpush1.msra.mxu0 %v611
        %645 = vmatprep.subr.mxu0 0.0
        %646 = vmatpush2.msra.mxu0 0.0
        %647 = vmatprep.subr.mxu0 0.0
        %648 = vmatpush2.msra.mxu0 0.0
        %649 = vmatprep.subr.mxu0 0.0
        %650 = vmatpush2.msra.mxu0 0.0
        %651 = vmatprep.subr.mxu0 0.0
        %652 = vmatpush2.msra.mxu0 0.0
        %653 = vmatprep.subr.mxu0 0.0
        %654 = vmatpush2.msra.mxu0 0.0
        %655 = vmatprep.subr.mxu0 0.0
        %656 = vmatpush2.msra.mxu0 0.0
        %657 = vmatprep.subr.mxu0 0.0
        %658 = vmatpush2.msra.mxu0 0.0
        %659 = vmatprep.subr.mxu0 0.0
        %660 = vmatpush2.msra.mxu0 0.0
        %661 = vmatprep.subr.mxu0 0.0
        %662 = vmatpush2.msra.mxu0 0.0
        %663 = vmatprep.subr.mxu0 0.0
        %664 = vmatpush2.msra.mxu0 0.0
        %665 = vmatprep.subr.mxu0 0.0
        %666 = vmatpush2.msra.mxu0 0.0
        %667 = vmatprep.subr.mxu0 0.0
        %668 = vmatpush2.msra.mxu0 0.0
        %669 = vmatprep.subr.mxu0 0.0
        %670 = vmatpush2.msra.mxu0 0.0
        %671 = vmatprep.subr.mxu0 0.0
        %672 = vmatpush2.msra.mxu0 0.0
        %673 = vmatprep.subr.mxu0 0.0
        %674 = vmatpush2.msra.mxu0 0.0
        %675 = vmatprep.subr.mxu0 0.0
        %676 = vmatpush2.msra.mxu0 0.0
        %677 = vmatprep.mubr.f32.mxu0 0.0
        %678 = vmatmul.mubr.f32.gmra.mxu0 %v578
        %v679 = vpop.f32.mrf.mxu0
        %v680 = vadd.f32 %v500, %v679
        %v681 = vpop.f32.mrf.mxu0
        %682 = vmatprep.mubr.f32.mxu0 0.0
        %683 = vmatmul.mubr.f32.gmra.mxu0 %v580
        %v684 = vpop.f32.mrf.mxu0
        %v685 = vadd.f32 %v505, %v684
        %v686 = vpop.f32.mrf.mxu0
        %687 = vmatprep.mubr.f32.mxu0 0.0
        %688 = vmatmul.mubr.f32.gmra.mxu0 %v582
        %v689 = vpop.f32.mrf.mxu0
        %v690 = vadd.f32 %v510, %v689
        %v691 = vpop.f32.mrf.mxu0
        %692 = vmatprep.mubr.f32.mxu0 0.0
        %693 = vmatmul.mubr.f32.gmra.mxu0 %v584
        %v694 = vpop.f32.mrf.mxu0
        %v695 = vadd.f32 %v515, %v694
        %v696 = vpop.f32.mrf.mxu0
        %697 = vmatprep.mubr.f32.mxu0 0.0
        %698 = vmatmul.mubr.f32.gmra.mxu0 %v586
        %v699 = vpop.f32.mrf.mxu0
        %v700 = vadd.f32 %v520, %v699
        %v701 = vpop.f32.mrf.mxu0
        %702 = vmatprep.mubr.f32.mxu0 0.0
        %703 = vmatmul.mubr.f32.gmra.mxu0 %v588
        %v704 = vpop.f32.mrf.mxu0
        %v705 = vadd.f32 %v525, %v704
        %v706 = vpop.f32.mrf.mxu0
        %707 = vmatprep.mubr.f32.mxu0 0.0
        %708 = vmatmul.mubr.f32.gmra.mxu0 %v590
        %v709 = vpop.f32.mrf.mxu0
        %v710 = vadd.f32 %v530, %v709
        %v711 = vpop.f32.mrf.mxu0
        %712 = vmatprep.mubr.f32.mxu0 0.0
        %713 = vmatmul.mubr.f32.gmra.mxu0 %v592
        %v714 = vpop.f32.mrf.mxu0
        %v715 = vadd.f32 %v535, %v714
        %v716 = vpop.f32.mrf.mxu0
        %717 = vmatprep.mubr.f32.mxu0 0.0
        %718 = vmatmul.mubr.f32.gmra.mxu0 %v594
        %v719 = vpop.f32.mrf.mxu0
        %v720 = vadd.f32 %v540, %v719
        %v721 = vpop.f32.mrf.mxu0
        %722 = vmatprep.mubr.f32.mxu0 0.0
        %723 = vmatmul.mubr.f32.gmra.mxu0 %v596
        %v724 = vpop.f32.mrf.mxu0
        %v725 = vadd.f32 %v545, %v724
        %v726 = vpop.f32.mrf.mxu0
        %727 = vmatprep.mubr.f32.mxu0 0.0
        %728 = vmatmul.mubr.f32.gmra.mxu0 %v598
        %v729 = vpop.f32.mrf.mxu0
        %v730 = vadd.f32 %v550, %v729
        %v731 = vpop.f32.mrf.mxu0
        %732 = vmatprep.mubr.f32.mxu0 0.0
        %733 = vmatmul.mubr.f32.gmra.mxu0 %v600
        %v734 = vpop.f32.mrf.mxu0
        %v735 = vadd.f32 %v555, %v734
        %v736 = vpop.f32.mrf.mxu0
        %737 = vmatprep.mubr.f32.mxu0 0.0
        %738 = vmatmul.mubr.f32.gmra.mxu0 %v602
        %v739 = vpop.f32.mrf.mxu0
        %v740 = vadd.f32 %v560, %v739
        %v741 = vpop.f32.mrf.mxu0
        %742 = vmatprep.mubr.f32.mxu0 0.0
        %743 = vmatmul.mubr.f32.gmra.mxu0 %v604
        %v744 = vpop.f32.mrf.mxu0
        %v745 = vadd.f32 %v565, %v744
        %v746 = vpop.f32.mrf.mxu0
        %747 = vmatprep.mubr.f32.mxu0 0.0
        %748 = vmatmul.mubr.f32.gmra.mxu0 %v606
        %v749 = vpop.f32.mrf.mxu0
        %v750 = vadd.f32 %v570, %v749
        %v751 = vpop.f32.mrf.mxu0
        %752 = vmatprep.mubr.f32.mxu0 0.0
        %753 = vmatmul.mubr.f32.gmra.mxu0 %v608
        %v754 = vpop.f32.mrf.mxu0
        %v755 = vadd.f32 %v575, %v754
        %v756 = vpop.f32.mrf.mxu0
        %757 = vdwg.mxu0
        %vm758 = vcmask 1045504
        %v759 = vrot.slane %v283, 2
        %v760 = vrot.slane %v284, 2
        %v761 = vsel %vm758, %v759, %v760
        %v762 = vrot.slane %v285, 2
        %v763 = vsel %vm758, %v760, %v762
        %v764 = vrot.slane %v286, 2
        %v765 = vrot.slane %v287, 2
        %v766 = vsel %vm758, %v764, %v765
        %v767 = vrot.slane %v288, 2
        %v768 = vsel %vm758, %v765, %v767
        %v769 = vrot.slane %v289, 2
        %v770 = vrot.slane %v290, 2
        %v771 = vsel %vm758, %v769, %v770
        %v772 = vrot.slane %v291, 2
        %v773 = vsel %vm758, %v770, %v772
        %v774 = vrot.slane %v292, 2
        %v775 = vrot.slane %v293, 2
        %v776 = vsel %vm758, %v774, %v775
        %v777 = vrot.slane %v294, 2
        %v778 = vsel %vm758, %v775, %v777
        %v779 = vrot.slane %v295, 2
        %v780 = vrot.slane %v296, 2
        %v781 = vsel %vm758, %v779, %v780
        %v782 = vrot.slane %v297, 2
        %v783 = vsel %vm758, %v780, %v782
        %v784 = vrot.slane %v298, 2
        %v785 = vrot.slane %v299, 2
        %v786 = vsel %vm758, %v784, %v785
        %v787 = vrot.slane %v300, 2
        %v788 = vsel %vm758, %v785, %v787
        %v789 = vrot.slane %v301, 2
        %v790 = vrot.slane %v302, 2
        %v791 = vsel %vm758, %v789, %v790
        %v792 = vrot.slane %v303, 2
        %v793 = vsel %vm758, %v790, %v792
        %v794 = vrot.slane %v304, 2
        %v795 = vrot.slane %v305, 2
        %v796 = vsel %vm758, %v794, %v795
        %v797 = vrot.slane %v306, 2
        %v798 = vsel %vm758, %v795, %v797
        %v799 = vsel %vm396, %v761, 0
        %v801 = vsel %vm396, %v763, 0
        %v803 = vsel %vm396, %v766, 0
        %v805 = vsel %vm396, %v768, 0
        %v807 = vsel %vm396, %v771, 0
        %v809 = vsel %vm396, %v773, 0
        %v811 = vsel %vm396, %v776, 0
        %v813 = vsel %vm396, %v778, 0
        %v815 = vsel %vm396, %v781, 0
        %v817 = vsel %vm396, %v783, 0
        %v819 = vsel %vm396, %v786, 0
        %v821 = vsel %vm396, %v788, 0
        %v823 = vsel %vm396, %v791, 0
        %v825 = vsel %vm396, %v793, 0
        %v827 = vsel %vm396, %v796, 0
        %v829 = vsel %vm396, %v798, 0
        %v832 = vsel %vm429, %v324, 0
        %834 = vmatprep.subr.mxu0 0.0
        %835 = vmatpush1.msra.mxu0 0.0
        %836 = vmatprep.subr.mxu0 0.0
        %837 = vmatpush1.msra.mxu0 0.0
        %838 = vmatprep.subr.mxu0 0.0
        %839 = vmatpush1.msra.mxu0 0.0
        %840 = vmatprep.subr.mxu0 0.0
        %841 = vmatpush1.msra.mxu0 0.0
        %842 = vmatprep.subr.mxu0 0.0
        %843 = vmatpush1.msra.mxu0 0.0
        %844 = vmatprep.subr.mxu0 0.0
        %845 = vmatpush1.msra.mxu0 0.0
        %846 = vmatprep.subr.mxu0 0.0
        %847 = vmatpush1.msra.mxu0 0.0
        %848 = vmatprep.subr.mxu0 0.0
        %849 = vmatpush1.msra.mxu0 0.0
        %850 = vmatprep.subr.mxu0 0.0
        %851 = vmatpush1.msra.mxu0 0.0
        %852 = vmatprep.subr.mxu0 0.0
        %853 = vmatpush1.msra.mxu0 0.0
        %854 = vmatprep.subr.mxu0 0.0
        %855 = vmatpush1.msra.mxu0 0.0
        %856 = vmatprep.subr.mxu0 0.0
        %857 = vmatpush1.msra.mxu0 0.0
        %858 = vmatprep.subr.mxu0 0.0
        %859 = vmatpush1.msra.mxu0 0.0
        %860 = vmatprep.subr.mxu0 0.0
        %861 = vmatpush1.msra.mxu0 0.0
        %862 = vmatprep.subr.mxu0 0.0
        %863 = vmatpush1.msra.mxu0 0.0
        %864 = vmatprep.subr.mxu0 0.0
        %865 = vmatpush1.msra.mxu0 %v832
        %866 = vmatprep.subr.mxu0 0.0
        %867 = vmatpush2.msra.mxu0 0.0
        %868 = vmatprep.subr.mxu0 0.0
        %869 = vmatpush2.msra.mxu0 0.0
        %870 = vmatprep.subr.mxu0 0.0
        %871 = vmatpush2.msra.mxu0 0.0
        %872 = vmatprep.subr.mxu0 0.0
        %873 = vmatpush2.msra.mxu0 0.0
        %874 = vmatprep.subr.mxu0 0.0
        %875 = vmatpush2.msra.mxu0 0.0
        %876 = vmatprep.subr.mxu0 0.0
        %877 = vmatpush2.msra.mxu0 0.0
        %878 = vmatprep.subr.mxu0 0.0
        %879 = vmatpush2.msra.mxu0 0.0
        %880 = vmatprep.subr.mxu0 0.0
        %881 = vmatpush2.msra.mxu0 0.0
        %882 = vmatprep.subr.mxu0 0.0
        %883 = vmatpush2.msra.mxu0 0.0
        %884 = vmatprep.subr.mxu0 0.0
        %885 = vmatpush2.msra.mxu0 0.0
        %886 = vmatprep.subr.mxu0 0.0
        %887 = vmatpush2.msra.mxu0 0.0
        %888 = vmatprep.subr.mxu0 0.0
        %889 = vmatpush2.msra.mxu0 0.0
        %890 = vmatprep.subr.mxu0 0.0
        %891 = vmatpush2.msra.mxu0 0.0
        %892 = vmatprep.subr.mxu0 0.0
        %893 = vmatpush2.msra.mxu0 0.0
        %894 = vmatprep.subr.mxu0 0.0
        %895 = vmatpush2.msra.mxu0 0.0
        %896 = vmatprep.subr.mxu0 0.0
        %897 = vmatpush2.msra.mxu0 0.0
        %898 = vmatprep.mubr.f32.mxu0 0.0
        %899 = vmatmul.mubr.f32.gmra.mxu0 %v799
        %v900 = vpop.f32.mrf.mxu0
        %v901 = vadd.f32 0.0, %v900
        %v902 = vpop.f32.mrf.mxu0
        %903 = vmatprep.mubr.f32.mxu0 0.0
        %904 = vmatmul.mubr.f32.gmra.mxu0 %v801
        %v905 = vpop.f32.mrf.mxu0
        %v906 = vadd.f32 0.0, %v905
        %v907 = vpop.f32.mrf.mxu0
        %908 = vmatprep.mubr.f32.mxu0 0.0
        %909 = vmatmul.mubr.f32.gmra.mxu0 %v803
        %v910 = vpop.f32.mrf.mxu0
        %v911 = vadd.f32 0.0, %v910
        %v912 = vpop.f32.mrf.mxu0
        %913 = vmatprep.mubr.f32.mxu0 0.0
        %914 = vmatmul.mubr.f32.gmra.mxu0 %v805
        %v915 = vpop.f32.mrf.mxu0
        %v916 = vadd.f32 0.0, %v915
        %v917 = vpop.f32.mrf.mxu0
        %918 = vmatprep.mubr.f32.mxu0 0.0
        %919 = vmatmul.mubr.f32.gmra.mxu0 %v807
        %v920 = vpop.f32.mrf.mxu0
        %v921 = vadd.f32 0.0, %v920
        %v922 = vpop.f32.mrf.mxu0
        %923 = vmatprep.mubr.f32.mxu0 0.0
        %924 = vmatmul.mubr.f32.gmra.mxu0 %v809
        %v925 = vpop.f32.mrf.mxu0
        %v926 = vadd.f32 0.0, %v925
        %v927 = vpop.f32.mrf.mxu0
        %928 = vmatprep.mubr.f32.mxu0 0.0
        %929 = vmatmul.mubr.f32.gmra.mxu0 %v811
        %v930 = vpop.f32.mrf.mxu0
        %v931 = vadd.f32 0.0, %v930
        %v932 = vpop.f32.mrf.mxu0
        %933 = vmatprep.mubr.f32.mxu0 0.0
        %934 = vmatmul.mubr.f32.gmra.mxu0 %v813
        %v935 = vpop.f32.mrf.mxu0
        %v936 = vadd.f32 0.0, %v935
        %v937 = vpop.f32.mrf.mxu0
        %938 = vmatprep.mubr.f32.mxu0 0.0
        %939 = vmatmul.mubr.f32.gmra.mxu0 %v815
        %v940 = vpop.f32.mrf.mxu0
        %v941 = vadd.f32 0.0, %v940
        %v942 = vpop.f32.mrf.mxu0
        %943 = vmatprep.mubr.f32.mxu0 0.0
        %944 = vmatmul.mubr.f32.gmra.mxu0 %v817
        %v945 = vpop.f32.mrf.mxu0
        %v946 = vadd.f32 0.0, %v945
        %v947 = vpop.f32.mrf.mxu0
        %948 = vmatprep.mubr.f32.mxu0 0.0
        %949 = vmatmul.mubr.f32.gmra.mxu0 %v819
        %v950 = vpop.f32.mrf.mxu0
        %v951 = vadd.f32 0.0, %v950
        %v952 = vpop.f32.mrf.mxu0
        %953 = vmatprep.mubr.f32.mxu0 0.0
        %954 = vmatmul.mubr.f32.gmra.mxu0 %v821
        %v955 = vpop.f32.mrf.mxu0
        %v956 = vadd.f32 0.0, %v955
        %v957 = vpop.f32.mrf.mxu0
        %958 = vmatprep.mubr.f32.mxu0 0.0
        %959 = vmatmul.mubr.f32.gmra.mxu0 %v823
        %v960 = vpop.f32.mrf.mxu0
        %v961 = vadd.f32 0.0, %v960
        %v962 = vpop.f32.mrf.mxu0
        %963 = vmatprep.mubr.f32.mxu0 0.0
        %964 = vmatmul.mubr.f32.gmra.mxu0 %v825
        %v965 = vpop.f32.mrf.mxu0
        %v966 = vadd.f32 0.0, %v965
        %v967 = vpop.f32.mrf.mxu0
        %968 = vmatprep.mubr.f32.mxu0 0.0
        %969 = vmatmul.mubr.f32.gmra.mxu0 %v827
        %v970 = vpop.f32.mrf.mxu0
        %v971 = vadd.f32 0.0, %v970
        %v972 = vpop.f32.mrf.mxu0
        %973 = vmatprep.mubr.f32.mxu0 0.0
        %974 = vmatmul.mubr.f32.gmra.mxu0 %v829
        %v975 = vpop.f32.mrf.mxu0
        %v976 = vadd.f32 0.0, %v975
        %v977 = vpop.f32.mrf.mxu0
        %978 = vdwg.mxu0
        %v979 = vadd.f32 %v680, %v901
        %v980 = vadd.f32 %v685, %v906
        %v981 = vadd.f32 %v690, %v911
        %v982 = vadd.f32 %v695, %v916
        %v983 = vadd.f32 %v700, %v921
        %v984 = vadd.f32 %v705, %v926
        %v985 = vadd.f32 %v710, %v931
        %v986 = vadd.f32 %v715, %v936
        %v987 = vadd.f32 %v720, %v941
        %v988 = vadd.f32 %v725, %v946
        %v989 = vadd.f32 %v730, %v951
        %v990 = vadd.f32 %v735, %v956
        %v991 = vadd.f32 %v740, %v961
        %v992 = vadd.f32 %v745, %v966
        %v993 = vadd.f32 %v750, %v971
        %v994 = vadd.f32 %v755, %v976
        %v996 = vsel %vm396, %v307, 0
        %v999 = vsel %vm396, %v308, 0
        %v1002 = vsel %vm429, %v325, 0
        %1004 = vmatprep.subr.mxu0 0.0
        %1005 = vmatpush1.msra.mxu0 0.0
        %1006 = vmatprep.subr.mxu0 0.0
        %1007 = vmatpush1.msra.mxu0 0.0
        %1008 = vmatprep.subr.mxu0 0.0
        %1009 = vmatpush1.msra.mxu0 0.0
        %1010 = vmatprep.subr.mxu0 0.0
        %1011 = vmatpush1.msra.mxu0 0.0
        %1012 = vmatprep.subr.mxu0 0.0
        %1013 = vmatpush1.msra.mxu0 0.0
        %1014 = vmatprep.subr.mxu0 0.0
        %1015 = vmatpush1.msra.mxu0 0.0
        %1016 = vmatprep.subr.mxu0 0.0
        %1017 = vmatpush1.msra.mxu0 0.0
        %1018 = vmatprep.subr.mxu0 0.0
        %1019 = vmatpush1.msra.mxu0 0.0
        %1020 = vmatprep.subr.mxu0 0.0
        %1021 = vmatpush1.msra.mxu0 0.0
        %1022 = vmatprep.subr.mxu0 0.0
        %1023 = vmatpush1.msra.mxu0 0.0
        %1024 = vmatprep.subr.mxu0 0.0
        %1025 = vmatpush1.msra.mxu0 0.0
        %1026 = vmatprep.subr.mxu0 0.0
        %1027 = vmatpush1.msra.mxu0 0.0
        %1028 = vmatprep.subr.mxu0 0.0
        %1029 = vmatpush1.msra.mxu0 0.0
        %1030 = vmatprep.subr.mxu0 0.0
        %1031 = vmatpush1.msra.mxu0 0.0
        %1032 = vmatprep.subr.mxu0 0.0
        %1033 = vmatpush1.msra.mxu0 0.0
        %1034 = vmatprep.subr.mxu0 0.0
        %1035 = vmatpush1.msra.mxu0 %v1002
        %1036 = vmatprep.subr.mxu0 0.0
        %1037 = vmatpush2.msra.mxu0 0.0
        %1038 = vmatprep.subr.mxu0 0.0
        %1039 = vmatpush2.msra.mxu0 0.0
        %1040 = vmatprep.subr.mxu0 0.0
        %1041 = vmatpush2.msra.mxu0 0.0
        %1042 = vmatprep.subr.mxu0 0.0
        %1043 = vmatpush2.msra.mxu0 0.0
        %1044 = vmatprep.subr.mxu0 0.0
        %1045 = vmatpush2.msra.mxu0 0.0
        %1046 = vmatprep.subr.mxu0 0.0
        %1047 = vmatpush2.msra.mxu0 0.0
        %1048 = vmatprep.subr.mxu0 0.0
        %1049 = vmatpush2.msra.mxu0 0.0
        %1050 = vmatprep.subr.mxu0 0.0
        %1051 = vmatpush2.msra.mxu0 0.0
        %1052 = vmatprep.subr.mxu0 0.0
        %1053 = vmatpush2.msra.mxu0 0.0
        %1054 = vmatprep.subr.mxu0 0.0
        %1055 = vmatpush2.msra.mxu0 0.0
        %1056 = vmatprep.subr.mxu0 0.0
        %1057 = vmatpush2.msra.mxu0 0.0
        %1058 = vmatprep.subr.mxu0 0.0
        %1059 = vmatpush2.msra.mxu0 0.0
        %1060 = vmatprep.subr.mxu0 0.0
        %1061 = vmatpush2.msra.mxu0 0.0
        %1062 = vmatprep.subr.mxu0 0.0
        %1063 = vmatpush2.msra.mxu0 0.0
        %1064 = vmatprep.subr.mxu0 0.0
        %1065 = vmatpush2.msra.mxu0 0.0
        %1066 = vmatprep.subr.mxu0 0.0
        %1067 = vmatpush2.msra.mxu0 0.0
        %1068 = vmatprep.mubr.f32.mxu0 0.0
        %1069 = vmatmul.mubr.f32.gmra.mxu0 %v582
        %v1070 = vpop.f32.mrf.mxu0
        %v1071 = vadd.f32 0.0, %v1070
        %v1072 = vpop.f32.mrf.mxu0
        %1073 = vmatprep.mubr.f32.mxu0 0.0
        %1074 = vmatmul.mubr.f32.gmra.mxu0 %v584
        %v1075 = vpop.f32.mrf.mxu0
        %v1076 = vadd.f32 0.0, %v1075
        %v1077 = vpop.f32.mrf.mxu0
        %1078 = vmatprep.mubr.f32.mxu0 0.0
        %1079 = vmatmul.mubr.f32.gmra.mxu0 %v586
        %v1080 = vpop.f32.mrf.mxu0
        %v1081 = vadd.f32 0.0, %v1080
        %v1082 = vpop.f32.mrf.mxu0
        %1083 = vmatprep.mubr.f32.mxu0 0.0
        %1084 = vmatmul.mubr.f32.gmra.mxu0 %v588
        %v1085 = vpop.f32.mrf.mxu0
        %v1086 = vadd.f32 0.0, %v1085
        %v1087 = vpop.f32.mrf.mxu0
        %1088 = vmatprep.mubr.f32.mxu0 0.0
        %1089 = vmatmul.mubr.f32.gmra.mxu0 %v590
        %v1090 = vpop.f32.mrf.mxu0
        %v1091 = vadd.f32 0.0, %v1090
        %v1092 = vpop.f32.mrf.mxu0
        %1093 = vmatprep.mubr.f32.mxu0 0.0
        %1094 = vmatmul.mubr.f32.gmra.mxu0 %v592
        %v1095 = vpop.f32.mrf.mxu0
        %v1096 = vadd.f32 0.0, %v1095
        %v1097 = vpop.f32.mrf.mxu0
        %1098 = vmatprep.mubr.f32.mxu0 0.0
        %1099 = vmatmul.mubr.f32.gmra.mxu0 %v594
        %v1100 = vpop.f32.mrf.mxu0
        %v1101 = vadd.f32 0.0, %v1100
        %v1102 = vpop.f32.mrf.mxu0
        %1103 = vmatprep.mubr.f32.mxu0 0.0
        %1104 = vmatmul.mubr.f32.gmra.mxu0 %v596
        %v1105 = vpop.f32.mrf.mxu0
        %v1106 = vadd.f32 0.0, %v1105
        %v1107 = vpop.f32.mrf.mxu0
        %1108 = vmatprep.mubr.f32.mxu0 0.0
        %1109 = vmatmul.mubr.f32.gmra.mxu0 %v598
        %v1110 = vpop.f32.mrf.mxu0
        %v1111 = vadd.f32 0.0, %v1110
        %v1112 = vpop.f32.mrf.mxu0
        %1113 = vmatprep.mubr.f32.mxu0 0.0
        %1114 = vmatmul.mubr.f32.gmra.mxu0 %v600
        %v1115 = vpop.f32.mrf.mxu0
        %v1116 = vadd.f32 0.0, %v1115
        %v1117 = vpop.f32.mrf.mxu0
        %1118 = vmatprep.mubr.f32.mxu0 0.0
        %1119 = vmatmul.mubr.f32.gmra.mxu0 %v602
        %v1120 = vpop.f32.mrf.mxu0
        %v1121 = vadd.f32 0.0, %v1120
        %v1122 = vpop.f32.mrf.mxu0
        %1123 = vmatprep.mubr.f32.mxu0 0.0
        %1124 = vmatmul.mubr.f32.gmra.mxu0 %v604
        %v1125 = vpop.f32.mrf.mxu0
        %v1126 = vadd.f32 0.0, %v1125
        %v1127 = vpop.f32.mrf.mxu0
        %1128 = vmatprep.mubr.f32.mxu0 0.0
        %1129 = vmatmul.mubr.f32.gmra.mxu0 %v606
        %v1130 = vpop.f32.mrf.mxu0
        %v1131 = vadd.f32 0.0, %v1130
        %v1132 = vpop.f32.mrf.mxu0
        %1133 = vmatprep.mubr.f32.mxu0 0.0
        %1134 = vmatmul.mubr.f32.gmra.mxu0 %v608
        %v1135 = vpop.f32.mrf.mxu0
        %v1136 = vadd.f32 0.0, %v1135
        %v1137 = vpop.f32.mrf.mxu0
        %1138 = vmatprep.mubr.f32.mxu0 0.0
        %1139 = vmatmul.mubr.f32.gmra.mxu0 %v996
        %v1140 = vpop.f32.mrf.mxu0
        %v1141 = vadd.f32 0.0, %v1140
        %v1142 = vpop.f32.mrf.mxu0
        %1143 = vmatprep.mubr.f32.mxu0 0.0
        %1144 = vmatmul.mubr.f32.gmra.mxu0 %v999
        %v1145 = vpop.f32.mrf.mxu0
        %v1146 = vadd.f32 0.0, %v1145
        %v1147 = vpop.f32.mrf.mxu0
        %1148 = vdwg.mxu0
        %v1149 = vadd.f32 %v979, %v1071
        %v1150 = vadd.f32 %v980, %v1076
        %v1151 = vadd.f32 %v981, %v1081
        %v1152 = vadd.f32 %v982, %v1086
        %v1153 = vadd.f32 %v983, %v1091
        %v1154 = vadd.f32 %v984, %v1096
        %v1155 = vadd.f32 %v985, %v1101
        %v1156 = vadd.f32 %v986, %v1106
        %v1157 = vadd.f32 %v987, %v1111
        %v1158 = vadd.f32 %v988, %v1116
        %v1159 = vadd.f32 %v989, %v1121
        %v1160 = vadd.f32 %v990, %v1126
        %v1161 = vadd.f32 %v991, %v1131
        %v1162 = vadd.f32 %v992, %v1136
        %v1163 = vadd.f32 %v993, %v1141
        %v1164 = vadd.f32 %v994, %v1146
        %v1166 = vrot.slane %v307, 1
        %v1167 = vrot.slane %v308, 1
        %v1168 = vsel %vm355, %v1166, %v1167
        %v1169 = vrot.slane %v309, 1
        %v1170 = vsel %vm355, %v1167, %v1169
        %v1171 = vsel %vm396, %v1168, 0
        %v1173 = vsel %vm396, %v1170, 0
        %v1176 = vsel %vm429, %v326, 0
        %1178 = vmatprep.subr.mxu0 0.0
        %1179 = vmatpush1.msra.mxu0 0.0
        %1180 = vmatprep.subr.mxu0 0.0
        %1181 = vmatpush1.msra.mxu0 0.0
        %1182 = vmatprep.subr.mxu0 0.0
        %1183 = vmatpush1.msra.mxu0 0.0
        %1184 = vmatprep.subr.mxu0 0.0
        %1185 = vmatpush1.msra.mxu0 0.0
        %1186 = vmatprep.subr.mxu0 0.0
        %1187 = vmatpush1.msra.mxu0 0.0
        %1188 = vmatprep.subr.mxu0 0.0
        %1189 = vmatpush1.msra.mxu0 0.0
        %1190 = vmatprep.subr.mxu0 0.0
        %1191 = vmatpush1.msra.mxu0 0.0
        %1192 = vmatprep.subr.mxu0 0.0
        %1193 = vmatpush1.msra.mxu0 0.0
        %1194 = vmatprep.subr.mxu0 0.0
        %1195 = vmatpush1.msra.mxu0 0.0
        %1196 = vmatprep.subr.mxu0 0.0
        %1197 = vmatpush1.msra.mxu0 0.0
        %1198 = vmatprep.subr.mxu0 0.0
        %1199 = vmatpush1.msra.mxu0 0.0
        %1200 = vmatprep.subr.mxu0 0.0
        %1201 = vmatpush1.msra.mxu0 0.0
        %1202 = vmatprep.subr.mxu0 0.0
        %1203 = vmatpush1.msra.mxu0 0.0
        %1204 = vmatprep.subr.mxu0 0.0
        %1205 = vmatpush1.msra.mxu0 0.0
        %1206 = vmatprep.subr.mxu0 0.0
        %1207 = vmatpush1.msra.mxu0 0.0
        %1208 = vmatprep.subr.mxu0 0.0
        %1209 = vmatpush1.msra.mxu0 %v1176
        %1210 = vmatprep.subr.mxu0 0.0
        %1211 = vmatpush2.msra.mxu0 0.0
        %1212 = vmatprep.subr.mxu0 0.0
        %1213 = vmatpush2.msra.mxu0 0.0
        %1214 = vmatprep.subr.mxu0 0.0
        %1215 = vmatpush2.msra.mxu0 0.0
        %1216 = vmatprep.subr.mxu0 0.0
        %1217 = vmatpush2.msra.mxu0 0.0
        %1218 = vmatprep.subr.mxu0 0.0
        %1219 = vmatpush2.msra.mxu0 0.0
        %1220 = vmatprep.subr.mxu0 0.0
        %1221 = vmatpush2.msra.mxu0 0.0
        %1222 = vmatprep.subr.mxu0 0.0
        %1223 = vmatpush2.msra.mxu0 0.0
        %1224 = vmatprep.subr.mxu0 0.0
        %1225 = vmatpush2.msra.mxu0 0.0
        %1226 = vmatprep.subr.mxu0 0.0
        %1227 = vmatpush2.msra.mxu0 0.0
        %1228 = vmatprep.subr.mxu0 0.0
        %1229 = vmatpush2.msra.mxu0 0.0
        %1230 = vmatprep.subr.mxu0 0.0
        %1231 = vmatpush2.msra.mxu0 0.0
        %1232 = vmatprep.subr.mxu0 0.0
        %1233 = vmatpush2.msra.mxu0 0.0
        %1234 = vmatprep.subr.mxu0 0.0
        %1235 = vmatpush2.msra.mxu0 0.0
        %1236 = vmatprep.subr.mxu0 0.0
        %1237 = vmatpush2.msra.mxu0 0.0
        %1238 = vmatprep.subr.mxu0 0.0
        %1239 = vmatpush2.msra.mxu0 0.0
        %1240 = vmatprep.subr.mxu0 0.0
        %1241 = vmatpush2.msra.mxu0 0.0
        %1242 = vmatprep.mubr.f32.mxu0 0.0
        %1243 = vmatmul.mubr.f32.gmra.mxu0 %v401
        %v1244 = vpop.f32.mrf.mxu0
        %v1245 = vadd.f32 0.0, %v1244
        %v1246 = vpop.f32.mrf.mxu0
        %1247 = vmatprep.mubr.f32.mxu0 0.0
        %1248 = vmatmul.mubr.f32.gmra.mxu0 %v403
        %v1249 = vpop.f32.mrf.mxu0
        %v1250 = vadd.f32 0.0, %v1249
        %v1251 = vpop.f32.mrf.mxu0
        %1252 = vmatprep.mubr.f32.mxu0 0.0
        %1253 = vmatmul.mubr.f32.gmra.mxu0 %v405
        %v1254 = vpop.f32.mrf.mxu0
        %v1255 = vadd.f32 0.0, %v1254
        %v1256 = vpop.f32.mrf.mxu0
        %1257 = vmatprep.mubr.f32.mxu0 0.0
        %1258 = vmatmul.mubr.f32.gmra.mxu0 %v407
        %v1259 = vpop.f32.mrf.mxu0
        %v1260 = vadd.f32 0.0, %v1259
        %v1261 = vpop.f32.mrf.mxu0
        %1262 = vmatprep.mubr.f32.mxu0 0.0
        %1263 = vmatmul.mubr.f32.gmra.mxu0 %v409
        %v1264 = vpop.f32.mrf.mxu0
        %v1265 = vadd.f32 0.0, %v1264
        %v1266 = vpop.f32.mrf.mxu0
        %1267 = vmatprep.mubr.f32.mxu0 0.0
        %1268 = vmatmul.mubr.f32.gmra.mxu0 %v411
        %v1269 = vpop.f32.mrf.mxu0
        %v1270 = vadd.f32 0.0, %v1269
        %v1271 = vpop.f32.mrf.mxu0
        %1272 = vmatprep.mubr.f32.mxu0 0.0
        %1273 = vmatmul.mubr.f32.gmra.mxu0 %v413
        %v1274 = vpop.f32.mrf.mxu0
        %v1275 = vadd.f32 0.0, %v1274
        %v1276 = vpop.f32.mrf.mxu0
        %1277 = vmatprep.mubr.f32.mxu0 0.0
        %1278 = vmatmul.mubr.f32.gmra.mxu0 %v415
        %v1279 = vpop.f32.mrf.mxu0
        %v1280 = vadd.f32 0.0, %v1279
        %v1281 = vpop.f32.mrf.mxu0
        %1282 = vmatprep.mubr.f32.mxu0 0.0
        %1283 = vmatmul.mubr.f32.gmra.mxu0 %v417
        %v1284 = vpop.f32.mrf.mxu0
        %v1285 = vadd.f32 0.0, %v1284
        %v1286 = vpop.f32.mrf.mxu0
        %1287 = vmatprep.mubr.f32.mxu0 0.0
        %1288 = vmatmul.mubr.f32.gmra.mxu0 %v419
        %v1289 = vpop.f32.mrf.mxu0
        %v1290 = vadd.f32 0.0, %v1289
        %v1291 = vpop.f32.mrf.mxu0
        %1292 = vmatprep.mubr.f32.mxu0 0.0
        %1293 = vmatmul.mubr.f32.gmra.mxu0 %v421
        %v1294 = vpop.f32.mrf.mxu0
        %v1295 = vadd.f32 0.0, %v1294
        %v1296 = vpop.f32.mrf.mxu0
        %1297 = vmatprep.mubr.f32.mxu0 0.0
        %1298 = vmatmul.mubr.f32.gmra.mxu0 %v423
        %v1299 = vpop.f32.mrf.mxu0
        %v1300 = vadd.f32 0.0, %v1299
        %v1301 = vpop.f32.mrf.mxu0
        %1302 = vmatprep.mubr.f32.mxu0 0.0
        %1303 = vmatmul.mubr.f32.gmra.mxu0 %v425
        %v1304 = vpop.f32.mrf.mxu0
        %v1305 = vadd.f32 0.0, %v1304
        %v1306 = vpop.f32.mrf.mxu0
        %1307 = vmatprep.mubr.f32.mxu0 0.0
        %1308 = vmatmul.mubr.f32.gmra.mxu0 %v427
        %v1309 = vpop.f32.mrf.mxu0
        %v1310 = vadd.f32 0.0, %v1309
        %v1311 = vpop.f32.mrf.mxu0
        %1312 = vmatprep.mubr.f32.mxu0 0.0
        %1313 = vmatmul.mubr.f32.gmra.mxu0 %v1171
        %v1314 = vpop.f32.mrf.mxu0
        %v1315 = vadd.f32 0.0, %v1314
        %v1316 = vpop.f32.mrf.mxu0
        %1317 = vmatprep.mubr.f32.mxu0 0.0
        %1318 = vmatmul.mubr.f32.gmra.mxu0 %v1173
        %v1319 = vpop.f32.mrf.mxu0
        %v1320 = vadd.f32 0.0, %v1319
        %v1321 = vpop.f32.mrf.mxu0
        %1322 = vdwg.mxu0
        %v1323 = vadd.f32 %v1149, %v1245
        %v1324 = vadd.f32 %v1150, %v1250
        %v1325 = vadd.f32 %v1151, %v1255
        %v1326 = vadd.f32 %v1152, %v1260
        %v1327 = vadd.f32 %v1153, %v1265
        %v1328 = vadd.f32 %v1154, %v1270
        %v1329 = vadd.f32 %v1155, %v1275
        %v1330 = vadd.f32 %v1156, %v1280
        %v1331 = vadd.f32 %v1157, %v1285
        %v1332 = vadd.f32 %v1158, %v1290
        %v1333 = vadd.f32 %v1159, %v1295
        %v1334 = vadd.f32 %v1160, %v1300
        %v1335 = vadd.f32 %v1161, %v1305
        %v1336 = vadd.f32 %v1162, %v1310
        %v1337 = vadd.f32 %v1163, %v1315
        %v1338 = vadd.f32 %v1164, %v1320
        %v1339 = vrot.slane %v307, 2
        %v1340 = vrot.slane %v308, 2
        %v1341 = vsel %vm758, %v1339, %v1340
        %v1342 = vrot.slane %v309, 2
        %v1343 = vsel %vm758, %v1340, %v1342
        %v1344 = vsel %vm396, %v1341, 0
        %v1346 = vsel %vm396, %v1343, 0
        %v1349 = vsel %vm429, %v327, 0
        %1351 = vmatprep.subr.mxu0 0.0
        %1352 = vmatpush1.msra.mxu0 0.0
        %1353 = vmatprep.subr.mxu0 0.0
        %1354 = vmatpush1.msra.mxu0 0.0
        %1355 = vmatprep.subr.mxu0 0.0
        %1356 = vmatpush1.msra.mxu0 0.0
        %1357 = vmatprep.subr.mxu0 0.0
        %1358 = vmatpush1.msra.mxu0 0.0
        %1359 = vmatprep.subr.mxu0 0.0
        %1360 = vmatpush1.msra.mxu0 0.0
        %1361 = vmatprep.subr.mxu0 0.0
        %1362 = vmatpush1.msra.mxu0 0.0
        %1363 = vmatprep.subr.mxu0 0.0
        %1364 = vmatpush1.msra.mxu0 0.0
        %1365 = vmatprep.subr.mxu0 0.0
        %1366 = vmatpush1.msra.mxu0 0.0
        %1367 = vmatprep.subr.mxu0 0.0
        %1368 = vmatpush1.msra.mxu0 0.0
        %1369 = vmatprep.subr.mxu0 0.0
        %1370 = vmatpush1.msra.mxu0 0.0
        %1371 = vmatprep.subr.mxu0 0.0
        %1372 = vmatpush1.msra.mxu0 0.0
        %1373 = vmatprep.subr.mxu0 0.0
        %1374 = vmatpush1.msra.mxu0 0.0
        %1375 = vmatprep.subr.mxu0 0.0
        %1376 = vmatpush1.msra.mxu0 0.0
        %1377 = vmatprep.subr.mxu0 0.0
        %1378 = vmatpush1.msra.mxu0 0.0
        %1379 = vmatprep.subr.mxu0 0.0
        %1380 = vmatpush1.msra.mxu0 0.0
        %1381 = vmatprep.subr.mxu0 0.0
        %1382 = vmatpush1.msra.mxu0 %v1349
        %1383 = vmatprep.subr.mxu0 0.0
        %1384 = vmatpush2.msra.mxu0 0.0
        %1385 = vmatprep.subr.mxu0 0.0
        %1386 = vmatpush2.msra.mxu0 0.0
        %1387 = vmatprep.subr.mxu0 0.0
        %1388 = vmatpush2.msra.mxu0 0.0
        %1389 = vmatprep.subr.mxu0 0.0
        %1390 = vmatpush2.msra.mxu0 0.0
        %1391 = vmatprep.subr.mxu0 0.0
        %1392 = vmatpush2.msra.mxu0 0.0
        %1393 = vmatprep.subr.mxu0 0.0
        %1394 = vmatpush2.msra.mxu0 0.0
        %1395 = vmatprep.subr.mxu0 0.0
        %1396 = vmatpush2.msra.mxu0 0.0
        %1397 = vmatprep.subr.mxu0 0.0
        %1398 = vmatpush2.msra.mxu0 0.0
        %1399 = vmatprep.subr.mxu0 0.0
        %1400 = vmatpush2.msra.mxu0 0.0
        %1401 = vmatprep.subr.mxu0 0.0
        %1402 = vmatpush2.msra.mxu0 0.0
        %1403 = vmatprep.subr.mxu0 0.0
        %1404 = vmatpush2.msra.mxu0 0.0
        %1405 = vmatprep.subr.mxu0 0.0
        %1406 = vmatpush2.msra.mxu0 0.0
        %1407 = vmatprep.subr.mxu0 0.0
        %1408 = vmatpush2.msra.mxu0 0.0
        %1409 = vmatprep.subr.mxu0 0.0
        %1410 = vmatpush2.msra.mxu0 0.0
        %1411 = vmatprep.subr.mxu0 0.0
        %1412 = vmatpush2.msra.mxu0 0.0
        %1413 = vmatprep.subr.mxu0 0.0
        %1414 = vmatpush2.msra.mxu0 0.0
        %1415 = vmatprep.mubr.f32.mxu0 0.0
        %1416 = vmatmul.mubr.f32.gmra.mxu0 %v803
        %v1417 = vpop.f32.mrf.mxu0
        %v1418 = vadd.f32 0.0, %v1417
        %v1419 = vpop.f32.mrf.mxu0
        %1420 = vmatprep.mubr.f32.mxu0 0.0
        %1421 = vmatmul.mubr.f32.gmra.mxu0 %v805
        %v1422 = vpop.f32.mrf.mxu0
        %v1423 = vadd.f32 0.0, %v1422
        %v1424 = vpop.f32.mrf.mxu0
        %1425 = vmatprep.mubr.f32.mxu0 0.0
        %1426 = vmatmul.mubr.f32.gmra.mxu0 %v807
        %v1427 = vpop.f32.mrf.mxu0
        %v1428 = vadd.f32 0.0, %v1427
        %v1429 = vpop.f32.mrf.mxu0
        %1430 = vmatprep.mubr.f32.mxu0 0.0
        %1431 = vmatmul.mubr.f32.gmra.mxu0 %v809
        %v1432 = vpop.f32.mrf.mxu0
        %v1433 = vadd.f32 0.0, %v1432
        %v1434 = vpop.f32.mrf.mxu0
        %1435 = vmatprep.mubr.f32.mxu0 0.0
        %1436 = vmatmul.mubr.f32.gmra.mxu0 %v811
        %v1437 = vpop.f32.mrf.mxu0
        %v1438 = vadd.f32 0.0, %v1437
        %v1439 = vpop.f32.mrf.mxu0
        %1440 = vmatprep.mubr.f32.mxu0 0.0
        %1441 = vmatmul.mubr.f32.gmra.mxu0 %v813
        %v1442 = vpop.f32.mrf.mxu0
        %v1443 = vadd.f32 0.0, %v1442
        %v1444 = vpop.f32.mrf.mxu0
        %1445 = vmatprep.mubr.f32.mxu0 0.0
        %1446 = vmatmul.mubr.f32.gmra.mxu0 %v815
        %v1447 = vpop.f32.mrf.mxu0
        %v1448 = vadd.f32 0.0, %v1447
        %v1449 = vpop.f32.mrf.mxu0
        %1450 = vmatprep.mubr.f32.mxu0 0.0
        %1451 = vmatmul.mubr.f32.gmra.mxu0 %v817
        %v1452 = vpop.f32.mrf.mxu0
        %v1453 = vadd.f32 0.0, %v1452
        %v1454 = vpop.f32.mrf.mxu0
        %1455 = vmatprep.mubr.f32.mxu0 0.0
        %1456 = vmatmul.mubr.f32.gmra.mxu0 %v819
        %v1457 = vpop.f32.mrf.mxu0
        %v1458 = vadd.f32 0.0, %v1457
        %v1459 = vpop.f32.mrf.mxu0
        %1460 = vmatprep.mubr.f32.mxu0 0.0
        %1461 = vmatmul.mubr.f32.gmra.mxu0 %v821
        %v1462 = vpop.f32.mrf.mxu0
        %v1463 = vadd.f32 0.0, %v1462
        %v1464 = vpop.f32.mrf.mxu0
        %1465 = vmatprep.mubr.f32.mxu0 0.0
        %1466 = vmatmul.mubr.f32.gmra.mxu0 %v823
        %v1467 = vpop.f32.mrf.mxu0
        %v1468 = vadd.f32 0.0, %v1467
        %v1469 = vpop.f32.mrf.mxu0
        %1470 = vmatprep.mubr.f32.mxu0 0.0
        %1471 = vmatmul.mubr.f32.gmra.mxu0 %v825
        %v1472 = vpop.f32.mrf.mxu0
        %v1473 = vadd.f32 0.0, %v1472
        %v1474 = vpop.f32.mrf.mxu0
        %1475 = vmatprep.mubr.f32.mxu0 0.0
        %1476 = vmatmul.mubr.f32.gmra.mxu0 %v827
        %v1477 = vpop.f32.mrf.mxu0
        %v1478 = vadd.f32 0.0, %v1477
        %v1479 = vpop.f32.mrf.mxu0
        %1480 = vmatprep.mubr.f32.mxu0 0.0
        %1481 = vmatmul.mubr.f32.gmra.mxu0 %v829
        %v1482 = vpop.f32.mrf.mxu0
        %v1483 = vadd.f32 0.0, %v1482
        %v1484 = vpop.f32.mrf.mxu0
        %1485 = vmatprep.mubr.f32.mxu0 0.0
        %1486 = vmatmul.mubr.f32.gmra.mxu0 %v1344
        %v1487 = vpop.f32.mrf.mxu0
        %v1488 = vadd.f32 0.0, %v1487
        %v1489 = vpop.f32.mrf.mxu0
        %1490 = vmatprep.mubr.f32.mxu0 0.0
        %1491 = vmatmul.mubr.f32.gmra.mxu0 %v1346
        %v1492 = vpop.f32.mrf.mxu0
        %v1493 = vadd.f32 0.0, %v1492
        %v1494 = vpop.f32.mrf.mxu0
        %1495 = vdwg.mxu0
        %v1496 = vadd.f32 %v1323, %v1418
        %v1497 = vadd.f32 %v1324, %v1423
        %v1498 = vadd.f32 %v1325, %v1428
        %v1499 = vadd.f32 %v1326, %v1433
        %v1500 = vadd.f32 %v1327, %v1438
        %v1501 = vadd.f32 %v1328, %v1443
        %v1502 = vadd.f32 %v1329, %v1448
        %v1503 = vadd.f32 %v1330, %v1453
        %v1504 = vadd.f32 %v1331, %v1458
        %v1505 = vadd.f32 %v1332, %v1463
        %v1506 = vadd.f32 %v1333, %v1468
        %v1507 = vadd.f32 %v1334, %v1473
        %v1508 = vadd.f32 %v1335, %v1478
        %v1509 = vadd.f32 %v1336, %v1483
        %v1510 = vadd.f32 %v1337, %v1488
        %v1511 = vadd.f32 %v1338, %v1493
        %v1513 = vsel %vm396, %v310, 0
        %v1516 = vsel %vm396, %v311, 0
        %v1519 = vsel %vm429, %v328, 0
        %1521 = vmatprep.subr.mxu0 0.0
        %1522 = vmatpush1.msra.mxu0 0.0
        %1523 = vmatprep.subr.mxu0 0.0
        %1524 = vmatpush1.msra.mxu0 0.0
        %1525 = vmatprep.subr.mxu0 0.0
        %1526 = vmatpush1.msra.mxu0 0.0
        %1527 = vmatprep.subr.mxu0 0.0
        %1528 = vmatpush1.msra.mxu0 0.0
        %1529 = vmatprep.subr.mxu0 0.0
        %1530 = vmatpush1.msra.mxu0 0.0
        %1531 = vmatprep.subr.mxu0 0.0
        %1532 = vmatpush1.msra.mxu0 0.0
        %1533 = vmatprep.subr.mxu0 0.0
        %1534 = vmatpush1.msra.mxu0 0.0
        %1535 = vmatprep.subr.mxu0 0.0
        %1536 = vmatpush1.msra.mxu0 0.0
        %1537 = vmatprep.subr.mxu0 0.0
        %1538 = vmatpush1.msra.mxu0 0.0
        %1539 = vmatprep.subr.mxu0 0.0
        %1540 = vmatpush1.msra.mxu0 0.0
        %1541 = vmatprep.subr.mxu0 0.0
        %1542 = vmatpush1.msra.mxu0 0.0
        %1543 = vmatprep.subr.mxu0 0.0
        %1544 = vmatpush1.msra.mxu0 0.0
        %1545 = vmatprep.subr.mxu0 0.0
        %1546 = vmatpush1.msra.mxu0 0.0
        %1547 = vmatprep.subr.mxu0 0.0
        %1548 = vmatpush1.msra.mxu0 0.0
        %1549 = vmatprep.subr.mxu0 0.0
        %1550 = vmatpush1.msra.mxu0 0.0
        %1551 = vmatprep.subr.mxu0 0.0
        %1552 = vmatpush1.msra.mxu0 %v1519
        %1553 = vmatprep.subr.mxu0 0.0
        %1554 = vmatpush2.msra.mxu0 0.0
        %1555 = vmatprep.subr.mxu0 0.0
        %1556 = vmatpush2.msra.mxu0 0.0
        %1557 = vmatprep.subr.mxu0 0.0
        %1558 = vmatpush2.msra.mxu0 0.0
        %1559 = vmatprep.subr.mxu0 0.0
        %1560 = vmatpush2.msra.mxu0 0.0
        %1561 = vmatprep.subr.mxu0 0.0
        %1562 = vmatpush2.msra.mxu0 0.0
        %1563 = vmatprep.subr.mxu0 0.0
        %1564 = vmatpush2.msra.mxu0 0.0
        %1565 = vmatprep.subr.mxu0 0.0
        %1566 = vmatpush2.msra.mxu0 0.0
        %1567 = vmatprep.subr.mxu0 0.0
        %1568 = vmatpush2.msra.mxu0 0.0
        %1569 = vmatprep.subr.mxu0 0.0
        %1570 = vmatpush2.msra.mxu0 0.0
        %1571 = vmatprep.subr.mxu0 0.0
        %1572 = vmatpush2.msra.mxu0 0.0
        %1573 = vmatprep.subr.mxu0 0.0
        %1574 = vmatpush2.msra.mxu0 0.0
        %1575 = vmatprep.subr.mxu0 0.0
        %1576 = vmatpush2.msra.mxu0 0.0
        %1577 = vmatprep.subr.mxu0 0.0
        %1578 = vmatpush2.msra.mxu0 0.0
        %1579 = vmatprep.subr.mxu0 0.0
        %1580 = vmatpush2.msra.mxu0 0.0
        %1581 = vmatprep.subr.mxu0 0.0
        %1582 = vmatpush2.msra.mxu0 0.0
        %1583 = vmatprep.subr.mxu0 0.0
        %1584 = vmatpush2.msra.mxu0 0.0
        %1585 = vmatprep.mubr.f32.mxu0 0.0
        %1586 = vmatmul.mubr.f32.gmra.mxu0 %v586
        %v1587 = vpop.f32.mrf.mxu0
        %v1588 = vadd.f32 0.0, %v1587
        %v1589 = vpop.f32.mrf.mxu0
        %1590 = vmatprep.mubr.f32.mxu0 0.0
        %1591 = vmatmul.mubr.f32.gmra.mxu0 %v588
        %v1592 = vpop.f32.mrf.mxu0
        %v1593 = vadd.f32 0.0, %v1592
        %v1594 = vpop.f32.mrf.mxu0
        %1595 = vmatprep.mubr.f32.mxu0 0.0
        %1596 = vmatmul.mubr.f32.gmra.mxu0 %v590
        %v1597 = vpop.f32.mrf.mxu0
        %v1598 = vadd.f32 0.0, %v1597
        %v1599 = vpop.f32.mrf.mxu0
        %1600 = vmatprep.mubr.f32.mxu0 0.0
        %1601 = vmatmul.mubr.f32.gmra.mxu0 %v592
        %v1602 = vpop.f32.mrf.mxu0
        %v1603 = vadd.f32 0.0, %v1602
        %v1604 = vpop.f32.mrf.mxu0
        %1605 = vmatprep.mubr.f32.mxu0 0.0
        %1606 = vmatmul.mubr.f32.gmra.mxu0 %v594
        %v1607 = vpop.f32.mrf.mxu0
        %v1608 = vadd.f32 0.0, %v1607
        %v1609 = vpop.f32.mrf.mxu0
        %1610 = vmatprep.mubr.f32.mxu0 0.0
        %1611 = vmatmul.mubr.f32.gmra.mxu0 %v596
        %v1612 = vpop.f32.mrf.mxu0
        %v1613 = vadd.f32 0.0, %v1612
        %v1614 = vpop.f32.mrf.mxu0
        %1615 = vmatprep.mubr.f32.mxu0 0.0
        %1616 = vmatmul.mubr.f32.gmra.mxu0 %v598
        %v1617 = vpop.f32.mrf.mxu0
        %v1618 = vadd.f32 0.0, %v1617
        %v1619 = vpop.f32.mrf.mxu0
        %1620 = vmatprep.mubr.f32.mxu0 0.0
        %1621 = vmatmul.mubr.f32.gmra.mxu0 %v600
        %v1622 = vpop.f32.mrf.mxu0
        %v1623 = vadd.f32 0.0, %v1622
        %v1624 = vpop.f32.mrf.mxu0
        %1625 = vmatprep.mubr.f32.mxu0 0.0
        %1626 = vmatmul.mubr.f32.gmra.mxu0 %v602
        %v1627 = vpop.f32.mrf.mxu0
        %v1628 = vadd.f32 0.0, %v1627
        %v1629 = vpop.f32.mrf.mxu0
        %1630 = vmatprep.mubr.f32.mxu0 0.0
        %1631 = vmatmul.mubr.f32.gmra.mxu0 %v604
        %v1632 = vpop.f32.mrf.mxu0
        %v1633 = vadd.f32 0.0, %v1632
        %v1634 = vpop.f32.mrf.mxu0
        %1635 = vmatprep.mubr.f32.mxu0 0.0
        %1636 = vmatmul.mubr.f32.gmra.mxu0 %v606
        %v1637 = vpop.f32.mrf.mxu0
        %v1638 = vadd.f32 0.0, %v1637
        %v1639 = vpop.f32.mrf.mxu0
        %1640 = vmatprep.mubr.f32.mxu0 0.0
        %1641 = vmatmul.mubr.f32.gmra.mxu0 %v608
        %v1642 = vpop.f32.mrf.mxu0
        %v1643 = vadd.f32 0.0, %v1642
        %v1644 = vpop.f32.mrf.mxu0
        %1645 = vmatprep.mubr.f32.mxu0 0.0
        %1646 = vmatmul.mubr.f32.gmra.mxu0 %v996
        %v1647 = vpop.f32.mrf.mxu0
        %v1648 = vadd.f32 0.0, %v1647
        %v1649 = vpop.f32.mrf.mxu0
        %1650 = vmatprep.mubr.f32.mxu0 0.0
        %1651 = vmatmul.mubr.f32.gmra.mxu0 %v999
        %v1652 = vpop.f32.mrf.mxu0
        %v1653 = vadd.f32 0.0, %v1652
        %v1654 = vpop.f32.mrf.mxu0
        %1655 = vmatprep.mubr.f32.mxu0 0.0
        %1656 = vmatmul.mubr.f32.gmra.mxu0 %v1513
        %v1657 = vpop.f32.mrf.mxu0
        %v1658 = vadd.f32 0.0, %v1657
        %v1659 = vpop.f32.mrf.mxu0
        %1660 = vmatprep.mubr.f32.mxu0 0.0
        %1661 = vmatmul.mubr.f32.gmra.mxu0 %v1516
        %v1662 = vpop.f32.mrf.mxu0
        %v1663 = vadd.f32 0.0, %v1662
        %v1664 = vpop.f32.mrf.mxu0
        %1665 = vdwg.mxu0
        %v1666 = vadd.f32 %v1496, %v1588
        %v1667 = vadd.f32 %v1497, %v1593
        %v1668 = vadd.f32 %v1498, %v1598
        %v1669 = vadd.f32 %v1499, %v1603
        %v1670 = vadd.f32 %v1500, %v1608
        %v1671 = vadd.f32 %v1501, %v1613
        %v1672 = vadd.f32 %v1502, %v1618
        %v1673 = vadd.f32 %v1503, %v1623
        %v1674 = vadd.f32 %v1504, %v1628
        %v1675 = vadd.f32 %v1505, %v1633
        %v1676 = vadd.f32 %v1506, %v1638
        %v1677 = vadd.f32 %v1507, %v1643
        %v1678 = vadd.f32 %v1508, %v1648
        %v1679 = vadd.f32 %v1509, %v1653
        %v1680 = vadd.f32 %v1510, %v1658
        %v1681 = vadd.f32 %v1511, %v1663
        %v1683 = vrot.slane %v310, 1
        %v1684 = vrot.slane %v311, 1
        %v1685 = vsel %vm355, %v1683, %v1684
        %v1686 = vrot.slane %v312, 1
        %v1687 = vsel %vm355, %v1684, %v1686
        %v1688 = vsel %vm396, %v1685, 0
        %v1690 = vsel %vm396, %v1687, 0
        %v1693 = vsel %vm429, %v329, 0
        %1695 = vmatprep.subr.mxu0 0.0
        %1696 = vmatpush1.msra.mxu0 0.0
        %1697 = vmatprep.subr.mxu0 0.0
        %1698 = vmatpush1.msra.mxu0 0.0
        %1699 = vmatprep.subr.mxu0 0.0
        %1700 = vmatpush1.msra.mxu0 0.0
        %1701 = vmatprep.subr.mxu0 0.0
        %1702 = vmatpush1.msra.mxu0 0.0
        %1703 = vmatprep.subr.mxu0 0.0
        %1704 = vmatpush1.msra.mxu0 0.0
        %1705 = vmatprep.subr.mxu0 0.0
        %1706 = vmatpush1.msra.mxu0 0.0
        %1707 = vmatprep.subr.mxu0 0.0
        %1708 = vmatpush1.msra.mxu0 0.0
        %1709 = vmatprep.subr.mxu0 0.0
        %1710 = vmatpush1.msra.mxu0 0.0
        %1711 = vmatprep.subr.mxu0 0.0
        %1712 = vmatpush1.msra.mxu0 0.0
        %1713 = vmatprep.subr.mxu0 0.0
        %1714 = vmatpush1.msra.mxu0 0.0
        %1715 = vmatprep.subr.mxu0 0.0
        %1716 = vmatpush1.msra.mxu0 0.0
        %1717 = vmatprep.subr.mxu0 0.0
        %1718 = vmatpush1.msra.mxu0 0.0
        %1719 = vmatprep.subr.mxu0 0.0
        %1720 = vmatpush1.msra.mxu0 0.0
        %1721 = vmatprep.subr.mxu0 0.0
        %1722 = vmatpush1.msra.mxu0 0.0
        %1723 = vmatprep.subr.mxu0 0.0
        %1724 = vmatpush1.msra.mxu0 0.0
        %1725 = vmatprep.subr.mxu0 0.0
        %1726 = vmatpush1.msra.mxu0 %v1693
        %1727 = vmatprep.subr.mxu0 0.0
        %1728 = vmatpush2.msra.mxu0 0.0
        %1729 = vmatprep.subr.mxu0 0.0
        %1730 = vmatpush2.msra.mxu0 0.0
        %1731 = vmatprep.subr.mxu0 0.0
        %1732 = vmatpush2.msra.mxu0 0.0
        %1733 = vmatprep.subr.mxu0 0.0
        %1734 = vmatpush2.msra.mxu0 0.0
        %1735 = vmatprep.subr.mxu0 0.0
        %1736 = vmatpush2.msra.mxu0 0.0
        %1737 = vmatprep.subr.mxu0 0.0
        %1738 = vmatpush2.msra.mxu0 0.0
        %1739 = vmatprep.subr.mxu0 0.0
        %1740 = vmatpush2.msra.mxu0 0.0
        %1741 = vmatprep.subr.mxu0 0.0
        %1742 = vmatpush2.msra.mxu0 0.0
        %1743 = vmatprep.subr.mxu0 0.0
        %1744 = vmatpush2.msra.mxu0 0.0
        %1745 = vmatprep.subr.mxu0 0.0
        %1746 = vmatpush2.msra.mxu0 0.0
        %1747 = vmatprep.subr.mxu0 0.0
        %1748 = vmatpush2.msra.mxu0 0.0
        %1749 = vmatprep.subr.mxu0 0.0
        %1750 = vmatpush2.msra.mxu0 0.0
        %1751 = vmatprep.subr.mxu0 0.0
        %1752 = vmatpush2.msra.mxu0 0.0
        %1753 = vmatprep.subr.mxu0 0.0
        %1754 = vmatpush2.msra.mxu0 0.0
        %1755 = vmatprep.subr.mxu0 0.0
        %1756 = vmatpush2.msra.mxu0 0.0
        %1757 = vmatprep.subr.mxu0 0.0
        %1758 = vmatpush2.msra.mxu0 0.0
        %1759 = vmatprep.mubr.f32.mxu0 0.0
        %1760 = vmatmul.mubr.f32.gmra.mxu0 %v405
        %v1761 = vpop.f32.mrf.mxu0
        %v1762 = vadd.f32 0.0, %v1761
        %v1763 = vpop.f32.mrf.mxu0
        %1764 = vmatprep.mubr.f32.mxu0 0.0
        %1765 = vmatmul.mubr.f32.gmra.mxu0 %v407
        %v1766 = vpop.f32.mrf.mxu0
        %v1767 = vadd.f32 0.0, %v1766
        %v1768 = vpop.f32.mrf.mxu0
        %1769 = vmatprep.mubr.f32.mxu0 0.0
        %1770 = vmatmul.mubr.f32.gmra.mxu0 %v409
        %v1771 = vpop.f32.mrf.mxu0
        %v1772 = vadd.f32 0.0, %v1771
        %v1773 = vpop.f32.mrf.mxu0
        %1774 = vmatprep.mubr.f32.mxu0 0.0
        %1775 = vmatmul.mubr.f32.gmra.mxu0 %v411
        %v1776 = vpop.f32.mrf.mxu0
        %v1777 = vadd.f32 0.0, %v1776
        %v1778 = vpop.f32.mrf.mxu0
        %1779 = vmatprep.mubr.f32.mxu0 0.0
        %1780 = vmatmul.mubr.f32.gmra.mxu0 %v413
        %v1781 = vpop.f32.mrf.mxu0
        %v1782 = vadd.f32 0.0, %v1781
        %v1783 = vpop.f32.mrf.mxu0
        %1784 = vmatprep.mubr.f32.mxu0 0.0
        %1785 = vmatmul.mubr.f32.gmra.mxu0 %v415
        %v1786 = vpop.f32.mrf.mxu0
        %v1787 = vadd.f32 0.0, %v1786
        %v1788 = vpop.f32.mrf.mxu0
        %1789 = vmatprep.mubr.f32.mxu0 0.0
        %1790 = vmatmul.mubr.f32.gmra.mxu0 %v417
        %v1791 = vpop.f32.mrf.mxu0
        %v1792 = vadd.f32 0.0, %v1791
        %v1793 = vpop.f32.mrf.mxu0
        %1794 = vmatprep.mubr.f32.mxu0 0.0
        %1795 = vmatmul.mubr.f32.gmra.mxu0 %v419
        %v1796 = vpop.f32.mrf.mxu0
        %v1797 = vadd.f32 0.0, %v1796
        %v1798 = vpop.f32.mrf.mxu0
        %1799 = vmatprep.mubr.f32.mxu0 0.0
        %1800 = vmatmul.mubr.f32.gmra.mxu0 %v421
        %v1801 = vpop.f32.mrf.mxu0
        %v1802 = vadd.f32 0.0, %v1801
        %v1803 = vpop.f32.mrf.mxu0
        %1804 = vmatprep.mubr.f32.mxu0 0.0
        %1805 = vmatmul.mubr.f32.gmra.mxu0 %v423
        %v1806 = vpop.f32.mrf.mxu0
        %v1807 = vadd.f32 0.0, %v1806
        %v1808 = vpop.f32.mrf.mxu0
        %1809 = vmatprep.mubr.f32.mxu0 0.0
        %1810 = vmatmul.mubr.f32.gmra.mxu0 %v425
        %v1811 = vpop.f32.mrf.mxu0
        %v1812 = vadd.f32 0.0, %v1811
        %v1813 = vpop.f32.mrf.mxu0
        %1814 = vmatprep.mubr.f32.mxu0 0.0
        %1815 = vmatmul.mubr.f32.gmra.mxu0 %v427
        %v1816 = vpop.f32.mrf.mxu0
        %v1817 = vadd.f32 0.0, %v1816
        %v1818 = vpop.f32.mrf.mxu0
        %1819 = vmatprep.mubr.f32.mxu0 0.0
        %1820 = vmatmul.mubr.f32.gmra.mxu0 %v1171
        %v1821 = vpop.f32.mrf.mxu0
        %v1822 = vadd.f32 0.0, %v1821
        %v1823 = vpop.f32.mrf.mxu0
        %1824 = vmatprep.mubr.f32.mxu0 0.0
        %1825 = vmatmul.mubr.f32.gmra.mxu0 %v1173
        %v1826 = vpop.f32.mrf.mxu0
        %v1827 = vadd.f32 0.0, %v1826
        %v1828 = vpop.f32.mrf.mxu0
        %1829 = vmatprep.mubr.f32.mxu0 0.0
        %1830 = vmatmul.mubr.f32.gmra.mxu0 %v1688
        %v1831 = vpop.f32.mrf.mxu0
        %v1832 = vadd.f32 0.0, %v1831
        %v1833 = vpop.f32.mrf.mxu0
        %1834 = vmatprep.mubr.f32.mxu0 0.0
        %1835 = vmatmul.mubr.f32.gmra.mxu0 %v1690
        %v1836 = vpop.f32.mrf.mxu0
        %v1837 = vadd.f32 0.0, %v1836
        %v1838 = vpop.f32.mrf.mxu0
        %1839 = vdwg.mxu0
        %v1840 = vadd.f32 %v1666, %v1762
        %v1841 = vadd.f32 %v1667, %v1767
        %v1842 = vadd.f32 %v1668, %v1772
        %v1843 = vadd.f32 %v1669, %v1777
        %v1844 = vadd.f32 %v1670, %v1782
        %v1845 = vadd.f32 %v1671, %v1787
        %v1846 = vadd.f32 %v1672, %v1792
        %v1847 = vadd.f32 %v1673, %v1797
        %v1848 = vadd.f32 %v1674, %v1802
        %v1849 = vadd.f32 %v1675, %v1807
        %v1850 = vadd.f32 %v1676, %v1812
        %v1851 = vadd.f32 %v1677, %v1817
        %v1852 = vadd.f32 %v1678, %v1822
        %v1853 = vadd.f32 %v1679, %v1827
        %v1854 = vadd.f32 %v1680, %v1832
        %v1855 = vadd.f32 %v1681, %v1837
        %v1856 = vrot.slane %v310, 2
        %v1857 = vrot.slane %v311, 2
        %v1858 = vsel %vm758, %v1856, %v1857
        %v1859 = vrot.slane %v312, 2
        %v1860 = vsel %vm758, %v1857, %v1859
        %v1861 = vsel %vm396, %v1858, 0
        %v1863 = vsel %vm396, %v1860, 0
        %v1866 = vsel %vm429, %v330, 0
        %1868 = vmatprep.subr.mxu0 0.0
        %1869 = vmatpush1.msra.mxu0 0.0
        %1870 = vmatprep.subr.mxu0 0.0
        %1871 = vmatpush1.msra.mxu0 0.0
        %1872 = vmatprep.subr.mxu0 0.0
        %1873 = vmatpush1.msra.mxu0 0.0
        %1874 = vmatprep.subr.mxu0 0.0
        %1875 = vmatpush1.msra.mxu0 0.0
        %1876 = vmatprep.subr.mxu0 0.0
        %1877 = vmatpush1.msra.mxu0 0.0
        %1878 = vmatprep.subr.mxu0 0.0
        %1879 = vmatpush1.msra.mxu0 0.0
        %1880 = vmatprep.subr.mxu0 0.0
        %1881 = vmatpush1.msra.mxu0 0.0
        %1882 = vmatprep.subr.mxu0 0.0
        %1883 = vmatpush1.msra.mxu0 0.0
        %1884 = vmatprep.subr.mxu0 0.0
        %1885 = vmatpush1.msra.mxu0 0.0
        %1886 = vmatprep.subr.mxu0 0.0
        %1887 = vmatpush1.msra.mxu0 0.0
        %1888 = vmatprep.subr.mxu0 0.0
        %1889 = vmatpush1.msra.mxu0 0.0
        %1890 = vmatprep.subr.mxu0 0.0
        %1891 = vmatpush1.msra.mxu0 0.0
        %1892 = vmatprep.subr.mxu0 0.0
        %1893 = vmatpush1.msra.mxu0 0.0
        %1894 = vmatprep.subr.mxu0 0.0
        %1895 = vmatpush1.msra.mxu0 0.0
        %1896 = vmatprep.subr.mxu0 0.0
        %1897 = vmatpush1.msra.mxu0 0.0
        %1898 = vmatprep.subr.mxu0 0.0
        %1899 = vmatpush1.msra.mxu0 %v1866
        %1900 = vmatprep.subr.mxu0 0.0
        %1901 = vmatpush2.msra.mxu0 0.0
        %1902 = vmatprep.subr.mxu0 0.0
        %1903 = vmatpush2.msra.mxu0 0.0
        %1904 = vmatprep.subr.mxu0 0.0
        %1905 = vmatpush2.msra.mxu0 0.0
        %1906 = vmatprep.subr.mxu0 0.0
        %1907 = vmatpush2.msra.mxu0 0.0
        %1908 = vmatprep.subr.mxu0 0.0
        %1909 = vmatpush2.msra.mxu0 0.0
        %1910 = vmatprep.subr.mxu0 0.0
        %1911 = vmatpush2.msra.mxu0 0.0
        %1912 = vmatprep.subr.mxu0 0.0
        %1913 = vmatpush2.msra.mxu0 0.0
        %1914 = vmatprep.subr.mxu0 0.0
        %1915 = vmatpush2.msra.mxu0 0.0
        %1916 = vmatprep.subr.mxu0 0.0
        %1917 = vmatpush2.msra.mxu0 0.0
        %1918 = vmatprep.subr.mxu0 0.0
        %1919 = vmatpush2.msra.mxu0 0.0
        %1920 = vmatprep.subr.mxu0 0.0
        %1921 = vmatpush2.msra.mxu0 0.0
        %1922 = vmatprep.subr.mxu0 0.0
        %1923 = vmatpush2.msra.mxu0 0.0
        %1924 = vmatprep.subr.mxu0 0.0
        %1925 = vmatpush2.msra.mxu0 0.0
        %1926 = vmatprep.subr.mxu0 0.0
        %1927 = vmatpush2.msra.mxu0 0.0
        %1928 = vmatprep.subr.mxu0 0.0
        %1929 = vmatpush2.msra.mxu0 0.0
        %1930 = vmatprep.subr.mxu0 0.0
        %1931 = vmatpush2.msra.mxu0 0.0
        %1932 = vmatprep.mubr.f32.mxu0 0.0
        %1933 = vmatmul.mubr.f32.gmra.mxu0 %v807
        %v1934 = vpop.f32.mrf.mxu0
        %v1935 = vadd.f32 0.0, %v1934
        %v1936 = vpop.f32.mrf.mxu0
        %1937 = vmatprep.mubr.f32.mxu0 0.0
        %1938 = vmatmul.mubr.f32.gmra.mxu0 %v809
        %v1939 = vpop.f32.mrf.mxu0
        %v1940 = vadd.f32 0.0, %v1939
        %v1941 = vpop.f32.mrf.mxu0
        %1942 = vmatprep.mubr.f32.mxu0 0.0
        %1943 = vmatmul.mubr.f32.gmra.mxu0 %v811
        %v1944 = vpop.f32.mrf.mxu0
        %v1945 = vadd.f32 0.0, %v1944
        %v1946 = vpop.f32.mrf.mxu0
        %1947 = vmatprep.mubr.f32.mxu0 0.0
        %1948 = vmatmul.mubr.f32.gmra.mxu0 %v813
        %v1949 = vpop.f32.mrf.mxu0
        %v1950 = vadd.f32 0.0, %v1949
        %v1951 = vpop.f32.mrf.mxu0
        %1952 = vmatprep.mubr.f32.mxu0 0.0
        %1953 = vmatmul.mubr.f32.gmra.mxu0 %v815
        %v1954 = vpop.f32.mrf.mxu0
        %v1955 = vadd.f32 0.0, %v1954
        %v1956 = vpop.f32.mrf.mxu0
        %1957 = vmatprep.mubr.f32.mxu0 0.0
        %1958 = vmatmul.mubr.f32.gmra.mxu0 %v817
        %v1959 = vpop.f32.mrf.mxu0
        %v1960 = vadd.f32 0.0, %v1959
        %v1961 = vpop.f32.mrf.mxu0
        %1962 = vmatprep.mubr.f32.mxu0 0.0
        %1963 = vmatmul.mubr.f32.gmra.mxu0 %v819
        %v1964 = vpop.f32.mrf.mxu0
        %v1965 = vadd.f32 0.0, %v1964
        %v1966 = vpop.f32.mrf.mxu0
        %1967 = vmatprep.mubr.f32.mxu0 0.0
        %1968 = vmatmul.mubr.f32.gmra.mxu0 %v821
        %v1969 = vpop.f32.mrf.mxu0
        %v1970 = vadd.f32 0.0, %v1969
        %v1971 = vpop.f32.mrf.mxu0
        %1972 = vmatprep.mubr.f32.mxu0 0.0
        %1973 = vmatmul.mubr.f32.gmra.mxu0 %v823
        %v1974 = vpop.f32.mrf.mxu0
        %v1975 = vadd.f32 0.0, %v1974
        %v1976 = vpop.f32.mrf.mxu0
        %1977 = vmatprep.mubr.f32.mxu0 0.0
        %1978 = vmatmul.mubr.f32.gmra.mxu0 %v825
        %v1979 = vpop.f32.mrf.mxu0
        %v1980 = vadd.f32 0.0, %v1979
        %v1981 = vpop.f32.mrf.mxu0
        %1982 = vmatprep.mubr.f32.mxu0 0.0
        %1983 = vmatmul.mubr.f32.gmra.mxu0 %v827
        %v1984 = vpop.f32.mrf.mxu0
        %v1985 = vadd.f32 0.0, %v1984
        %v1986 = vpop.f32.mrf.mxu0
        %1987 = vmatprep.mubr.f32.mxu0 0.0
        %1988 = vmatmul.mubr.f32.gmra.mxu0 %v829
        %v1989 = vpop.f32.mrf.mxu0
        %v1990 = vadd.f32 0.0, %v1989
        %v1991 = vpop.f32.mrf.mxu0
        %1992 = vmatprep.mubr.f32.mxu0 0.0
        %1993 = vmatmul.mubr.f32.gmra.mxu0 %v1344
        %v1994 = vpop.f32.mrf.mxu0
        %v1995 = vadd.f32 0.0, %v1994
        %v1996 = vpop.f32.mrf.mxu0
        %1997 = vmatprep.mubr.f32.mxu0 0.0
        %1998 = vmatmul.mubr.f32.gmra.mxu0 %v1346
        %v1999 = vpop.f32.mrf.mxu0
        %v2000 = vadd.f32 0.0, %v1999
        %v2001 = vpop.f32.mrf.mxu0
        %2002 = vmatprep.mubr.f32.mxu0 0.0
        %2003 = vmatmul.mubr.f32.gmra.mxu0 %v1861
        %v2004 = vpop.f32.mrf.mxu0
        %v2005 = vadd.f32 0.0, %v2004
        %v2006 = vpop.f32.mrf.mxu0
        %2007 = vmatprep.mubr.f32.mxu0 0.0
        %2008 = vmatmul.mubr.f32.gmra.mxu0 %v1863
        %v2009 = vpop.f32.mrf.mxu0
        %v2010 = vadd.f32 0.0, %v2009
        %v2011 = vpop.f32.mrf.mxu0
        %2012 = vdwg.mxu0
        %v2013 = vadd.f32 %v1840, %v1935
        %v2014 = vadd.f32 %v1841, %v1940
        %v2015 = vadd.f32 %v1842, %v1945
        %v2016 = vadd.f32 %v1843, %v1950
        %v2017 = vadd.f32 %v1844, %v1955
        %v2018 = vadd.f32 %v1845, %v1960
        %v2019 = vadd.f32 %v1846, %v1965
        %v2020 = vadd.f32 %v1847, %v1970
        %v2021 = vadd.f32 %v1848, %v1975
        %v2022 = vadd.f32 %v1849, %v1980
        %v2023 = vadd.f32 %v1850, %v1985
        %v2024 = vadd.f32 %v1851, %v1990
        %v2025 = vadd.f32 %v1852, %v1995
        %v2026 = vadd.f32 %v1853, %v2000
        %v2027 = vadd.f32 %v1854, %v2005
        %v2028 = vadd.f32 %v1855, %v2010
        %v2029 = vld [vmem:[%s2] sm:$0x1]
        %v2031 = vlaneseq
        %v2032 = vshrl.u32 %v2031, 7
        %v2033 = vsub.s32 0, %v2032
        %v2034 = vrot.slane %v2029, %v2033
        %v2036 = vadd.f32 %v2013, %v2034
        %v2037 = vadd.f32 %v2014, %v2034
        %v2038 = vadd.f32 %v2015, %v2034
        %v2039 = vadd.f32 %v2016, %v2034
        %v2040 = vadd.f32 %v2017, %v2034
        %v2041 = vadd.f32 %v2018, %v2034
        %v2042 = vadd.f32 %v2019, %v2034
        %v2043 = vadd.f32 %v2020, %v2034
        %v2044 = vadd.f32 %v2021, %v2034
        %v2045 = vadd.f32 %v2022, %v2034
        %v2046 = vadd.f32 %v2023, %v2034
        %v2047 = vadd.f32 %v2024, %v2034
        %v2048 = vadd.f32 %v2025, %v2034
        %v2049 = vadd.f32 %v2026, %v2034
        %v2050 = vadd.f32 %v2027, %v2034
        %v2051 = vadd.f32 %v2028, %v2034
        %v2052 = vmax.f32 %v2036, 0.0
        %v2053 = vmax.f32 %v2037, 0.0
        %v2054 = vmax.f32 %v2038, 0.0
        %v2055 = vmax.f32 %v2039, 0.0
        %v2056 = vmax.f32 %v2040, 0.0
        %v2057 = vmax.f32 %v2041, 0.0
        %v2058 = vmax.f32 %v2042, 0.0
        %v2059 = vmax.f32 %v2043, 0.0
        %v2060 = vmax.f32 %v2044, 0.0
        %v2061 = vmax.f32 %v2045, 0.0
        %v2062 = vmax.f32 %v2046, 0.0
        %v2063 = vmax.f32 %v2047, 0.0
        %v2064 = vmax.f32 %v2048, 0.0
        %v2065 = vmax.f32 %v2049, 0.0
        %v2066 = vmax.f32 %v2050, 0.0
        %v2067 = vmax.f32 %v2051, 0.0
        %v2068 = vld [vmem:[#allocation2] sm:$0x1]
        %v2069 = vadd.f32 %v2052, %v2053
        %v2070 = vadd.f32 %v2069, %v2054
        %v2071 = vadd.f32 %v2070, %v2055
        %v2072 = vadd.f32 %v2071, %v2056
        %v2073 = vadd.f32 %v2072, %v2057
        %v2074 = vadd.f32 %v2073, %v2058
        %v2075 = vadd.f32 %v2074, %v2059
        %v2076 = vadd.f32 %v2075, %v2060
        %v2077 = vadd.f32 %v2076, %v2061
        %v2078 = vadd.f32 %v2077, %v2062
        %v2079 = vadd.f32 %v2078, %v2063
        %v2080 = vadd.f32 %v2079, %v2064
        %v2081 = vadd.f32 %v2080, %v2065
        %v2082 = vadd.f32 %v2081, %v2066
        %v2083 = vadd.f32 %v2082, %v2067
        %v2084 = vrot.slane %v2083, 4
        %v2085 = vadd.f32 %v2083, %v2084
        %v2086 = vrot.slane %v2085, 2
        %v2087 = vadd.f32 %v2085, %v2086
        %v2088 = vrot.slane %v2087, 1
        %v2089 = vadd.f32 %v2087, %v2088
        %v2090 = vadd.f32 %v2068, %v2089
        %2091 = vst [vmem:[#allocation2] sm:$0x1] %v2090
        %p2092 = scmp.eq.s32.totalorder %s24, 1
        // Predicated region
        $region45: #{model_forward.1} parent=39 // pred_check
          %p2093 = pneg %p2092
        $region46: #{model_forward.1} parent=39 // pred_check_branch
          %2095 = sbr.rel (%p2093) target = $region48
        $region47: #{model_forward.1} parent=39 // pred_region
          %v2096 = vld [vmem:[#allocation2] sm:$0x1]
          %v2097 = vmul.f32 %v2096, 0.00390625
          %v2098 = vld [vmem:[%s3] sm:$0xff]
          %v2099 = vld [vmem:[%s3 + $0x8] sm:$0xff]
          %v2100 = vld [vmem:[%s3 + $0x10] sm:$0xff]
          %v2101 = vld [vmem:[%s3 + $0x18] sm:$0xff]
          %v2102 = vld [vmem:[%s3 + $0x20] sm:$0xff]
          %v2103 = vld [vmem:[%s3 + $0x28] sm:$0xff]
          %v2104 = vld [vmem:[%s3 + $0x30] sm:$0xff]
          %v2105 = vld [vmem:[%s3 + $0x38] sm:$0xff]
          %v2106 = vld [vmem:[%s3 + $0x40] sm:$0xff]
          %v2107 = vld [vmem:[%s3 + $0x48] sm:$0xff]
          %v2108 = vld [vmem:[%s3 + $0x50] sm:$0xff]
          %v2109 = vld [vmem:[%s3 + $0x58] sm:$0xff]
          %v2110 = vld [vmem:[%s3 + $0x60] sm:$0xff]
          %v2111 = vld [vmem:[%s3 + $0x68] sm:$0xff]
          %v2112 = vld [vmem:[%s3 + $0x70] sm:$0xff]
          %v2113 = vld [vmem:[%s3 + $0x78] sm:$0xff]
          %v2114 = vld [vmem:[%s4] sm:$0x1]
          %2115 = vmatprep.subr.mxu0 0.0
          %2116 = vmatpush1.msra.mxu0 %v2113
          %2117 = vmatprep.subr.mxu0 0.0
          %2118 = vmatpush1.msra.mxu0 %v2112
          %2119 = vmatprep.subr.mxu0 0.0
          %2120 = vmatpush1.msra.mxu0 %v2111
          %2121 = vmatprep.subr.mxu0 0.0
          %2122 = vmatpush1.msra.mxu0 %v2110
          %2123 = vmatprep.subr.mxu0 0.0
          %2124 = vmatpush1.msra.mxu0 %v2109
          %2125 = vmatprep.subr.mxu0 0.0
          %2126 = vmatpush1.msra.mxu0 %v2108
          %2127 = vmatprep.subr.mxu0 0.0
          %2128 = vmatpush1.msra.mxu0 %v2107
          %2129 = vmatprep.subr.mxu0 0.0
          %2130 = vmatpush1.msra.mxu0 %v2106
          %2131 = vmatprep.subr.mxu0 0.0
          %2132 = vmatpush1.msra.mxu0 %v2105
          %2133 = vmatprep.subr.mxu0 0.0
          %2134 = vmatpush1.msra.mxu0 %v2104
          %2135 = vmatprep.subr.mxu0 0.0
          %2136 = vmatpush1.msra.mxu0 %v2103
          %2137 = vmatprep.subr.mxu0 0.0
          %2138 = vmatpush1.msra.mxu0 %v2102
          %2139 = vmatprep.subr.mxu0 0.0
          %2140 = vmatpush1.msra.mxu0 %v2101
          %2141 = vmatprep.subr.mxu0 0.0
          %2142 = vmatpush1.msra.mxu0 %v2100
          %2143 = vmatprep.subr.mxu0 0.0
          %2144 = vmatpush1.msra.mxu0 %v2099
          %2145 = vmatprep.subr.mxu0 0.0
          %2146 = vmatpush1.msra.mxu0 %v2098
          %2147 = vmatprep.subr.mxu0 0.0
          %2148 = vmatpush2.msra.mxu0 0.0
          %2149 = vmatprep.subr.mxu0 0.0
          %2150 = vmatpush2.msra.mxu0 0.0
          %2151 = vmatprep.subr.mxu0 0.0
          %2152 = vmatpush2.msra.mxu0 0.0
          %2153 = vmatprep.subr.mxu0 0.0
          %2154 = vmatpush2.msra.mxu0 0.0
          %2155 = vmatprep.subr.mxu0 0.0
          %2156 = vmatpush2.msra.mxu0 0.0
          %2157 = vmatprep.subr.mxu0 0.0
          %2158 = vmatpush2.msra.mxu0 0.0
          %2159 = vmatprep.subr.mxu0 0.0
          %2160 = vmatpush2.msra.mxu0 0.0
          %2161 = vmatprep.subr.mxu0 0.0
          %2162 = vmatpush2.msra.mxu0 0.0
          %2163 = vmatprep.subr.mxu0 0.0
          %2164 = vmatpush2.msra.mxu0 0.0
          %2165 = vmatprep.subr.mxu0 0.0
          %2166 = vmatpush2.msra.mxu0 0.0
          %2167 = vmatprep.subr.mxu0 0.0
          %2168 = vmatpush2.msra.mxu0 0.0
          %2169 = vmatprep.subr.mxu0 0.0
          %2170 = vmatpush2.msra.mxu0 0.0
          %2171 = vmatprep.subr.mxu0 0.0
          %2172 = vmatpush2.msra.mxu0 0.0
          %2173 = vmatprep.subr.mxu0 0.0
          %2174 = vmatpush2.msra.mxu0 0.0
          %2175 = vmatprep.subr.mxu0 0.0
          %2176 = vmatpush2.msra.mxu0 0.0
          %2177 = vmatprep.subr.mxu0 0.0
          %2178 = vmatpush2.msra.mxu0 0.0
          %2179 = vmatprep.mubr.f32.mxu0 0.0
          %2180 = vmatmul.mubr.f32.gmra.mxu0 %v2097
          %v2181 = vpop.f32.mrf.mxu0
          %v2182 = vadd.f32 %v2114, %v2181
          %v2183 = vpop.f32.mrf.mxu0
          %2184 = vdwg.mxu0
          %2185 = vst [vmem:[%s238] sm:$0x1] %v2182
        $region48: #{model_forward.1} parent=39 // pred_fallthru
          _
        %s2186 = sand.u32 %s153, 1
        %s2187 = scalar_lea.sflag [#allocation4], %s2186
        %s2188 = sand.u32 %s153, 1
        %s2189 = scalar_lea.vmem [#allocation3], %s2188
        // Predicated region
        $region49: #{model_forward.1} parent=39 // pred_check
          %p2190 = pneg %p163
        $region50: #{model_forward.1} parent=39 // pred_check_branch
          %2192 = sbr.rel (%p2190) target = $region52
        $region51: #{model_forward.1} parent=39 // pred_region
          %s2194 = ssub.s32 16, 16
          %2195 = vsyncadd %s2187, %s2194
          %s2196 = smul.addr %s23, 16
          %s2197 = scalar_lea.hbm %s5, %s2196
          %s2199 = sshll.u32 %s2189, 4
          %s2200 = int_to_ptr.vmem [resolvable:$true] %s2199
          %2202 = dma.vmem_to_hbm [thread:$0]  %s2200, 16, %s2197, %s2187
        $region52: #{model_forward.1} parent=39 // pred_fallthru
          _
      $region40: #{model_forward.1} parent=5 // pred_fallthru
        _
      %p2203 = scmp.le.s32.totalorder 2, %s14
      // Predicated region
      $region53: #{model_forward.1} parent=5 // pred_check
        %p2204 = pneg %p2203
      $region54: #{model_forward.1} parent=5 // pred_check_branch
        %2206 = sbr.rel (%p2204) target = $region56
      $region55: #{model_forward.1} parent=5 // pred_region
        %s2207 = ssub.s32 %s14, 2
        // Predicated region
        $region57: #{model_forward.1} parent=55 // pred_check
          %p2208 = pneg %p169
        $region58: #{model_forward.1} parent=55 // pred_check_branch
          %2210 = sbr.rel (%p2208) target = $region60
        $region59: #{model_forward.1} parent=55 // pred_region
          %s2211 = sand.u32 %s154, 1
          %s2212 = scalar_lea.sflag [#allocation4], %s2211
          %s2213 = sand.u32 %s154, 1
          %s2214 = scalar_lea.vmem [#allocation3], %s2213
          %2215 = dma.done %s2212, 16
        $region60: #{model_forward.1} parent=55 // pred_fallthru
          _
      $region56: #{model_forward.1} parent=5 // pred_fallthru
        _
    $region6: #{model_forward.1} parent=1 // loop_footer
      %s18 = sadd.s32 1, %s14
    $region7: #{model_forward.1} parent=1 // loop_footer_branch
      %13 = sbr.rel target = $region3
    $region8: #{model_forward.1} parent=1 // loop_exit
      _
    %2216 = vsyncpa [#allocation4], 1
    %s2217 = scalar_lea.sflag [#allocation4], 1
    %2218 = vsyncpa %s2217, 1

</llo_original>
